<compile_context>
chip_gen: v5e
topology: v5e:2x2
jax: 0.10.0
libtpu: 0.0.40
codegen_flags: <defaults>
</compile_context>

<pallas_src>
import functools

import jax
import jax.numpy as jnp
from jax import lax
from jax.experimental import pallas as pl
from jax.experimental.pallas import tpu as pltpu

EPS = 1e-5
LANE = 128


def _round_up(x, m):
    return (x + m - 1) // m * m


def _chip_vmem_bytes():
    try:
        info = pltpu.get_tpu_info()
        for attr in ("vmem_capacity_bytes", "vmem_size_bytes", "vmem_bytes"):
            v = getattr(info, attr, None)
            if v:
                return int(v)
    except Exception:
        pass
    return 128 * 1024 * 1024


_CHIP_VMEM = _chip_vmem_bytes()
# Generation-aware scoped-VMEM budget (~60% of physical: ~76 MiB v5e/v6e, ~38 MiB v7x).
VMEM_LIMIT = int(min(0.6 * _CHIP_VMEM, 96 * 1024 * 1024))
# Row-tile cap: bigger tiles amortize the ~0.35us/step overhead on 128 MiB parts; keep
# tiles smaller on v7x (64 MiB VMEM + finer megacore work partitioning).
ROW_TILE_CAP = 1024 if _CHIP_VMEM >= 96 * 1024 * 1024 else 512


def _choose_rows(m, cap):
    """Pick a row tile (multiple of 8, <= cap) and the (possibly padded) row count.

    Prefers a tile that divides m exactly; otherwise pads m up so the grid is exact.
    Padded zero rows are masked out of the BN statistics and sliced off outside, so
    awkward N*H*W never falls back to a single whole-array tile (VMEM blow-up)."""
    cap = max(8, min(cap, _round_up(m, 8)))
    cap -= cap % 8
    for t in range(cap, 7, -8):
        if m % t == 0:
            return t, m
    return cap, _round_up(m, cap)


def _pad_rows(a, m_pad):
    if a.shape[0] == m_pad:
        return a
    return jnp.zeros((m_pad,) + a.shape[1:], a.dtype).at[: a.shape[0]].set(a)


def _pad_vec(v, n):
    return jnp.zeros((n,), jnp.float32).at[: v.shape[0]].set(v)


def _buffered_spec(shape, index_map, depth):
    """BlockSpec with deeper pipelining when the running JAX supports pipeline_mode."""
    buffered = getattr(pl, "Buffered", None)
    if buffered is not None:
        try:
            return pl.BlockSpec(shape, index_map, pipeline_mode=buffered(depth))
        except TypeError:
            pass
    return pl.BlockSpec(shape, index_map)


# ---------------------------------------------------------------------------
# Kernel A/C: [optional folded BN+ReLU on the loaded tile] -> GEMM (bf16 -> f32)
#             -> per-tile channel sum / sum-of-squares (BN pass 1, de-carried).
# ---------------------------------------------------------------------------
def _gemm_stats_kernel(apply_act, valid_rows, *refs):
    if apply_act:
        x_ref, sc_ref, sh_ref, w_ref, h_ref, sum_ref, sq_ref = refs
    else:
        x_ref, w_ref, h_ref, sum_ref, sq_ref = refs

    x = x_ref[...]
    if apply_act:
        # Previous stage's BN folded into a single affine, + ReLU (f32 VPU math).
        x = jnp.maximum(x.astype(jnp.float32) * sc_ref[...] + sh_ref[...], 0.0)
        x = x.astype(jnp.bfloat16)                      # bf16 operands into the MXU

    h = jnp.dot(x, w_ref[...], preferred_element_type=jnp.float32)
    h_ref[...] = h.astype(h_ref.dtype)

    # Per-tile BN partial statistics (no carried accumulator -> grid stays "parallel").
    hs = h
    if valid_rows is not None:
        # Row-padded tail must not pollute the statistics.
        row = (pl.program_id(0) * h.shape[0]
               + lax.broadcasted_iota(jnp.int32, (h.shape[0], 1), 0))
        hs = jnp.where(row < valid_rows, h, 0.0)
    sum_ref[0] = jnp.sum(hs, axis=0, keepdims=True)
    sq_ref[0] = jnp.sum(hs * hs, axis=0, keepdims=True)


def gemm_bn_stats(x, w, scale=None, shift=None, *, tm, valid_rows=None):
    """h = (relu(x*scale+shift) if scale is given else x) @ w, plus per-tile sum/sumsq."""
    M, K = x.shape
    cout = w.shape[1]
    nt = M // tm
    apply_act = scale is not None

    args = [x]
    in_specs = [pl.BlockSpec((tm, K), lambda i: (i, 0))]
    if apply_act:
        args += [scale.astype(jnp.float32), shift.astype(jnp.float32)]
        in_specs += [pl.BlockSpec((1, K), lambda i: (0, 0)),
                     pl.BlockSpec((1, K), lambda i: (0, 0))]
    args.append(w)
    in_specs.append(pl.BlockSpec((K, cout), lambda i: (0, 0)))

    return pl.pallas_call(
        functools.partial(_gemm_stats_kernel, apply_act, valid_rows),
        grid=(nt,),
        in_specs=in_specs,
        out_specs=(pl.BlockSpec((tm, cout), lambda i: (i, 0)),
                   pl.BlockSpec((1, 1, cout), lambda i: (i, 0, 0)),
                   pl.BlockSpec((1, 1, cout), lambda i: (i, 0, 0))),
        out_shape=(jax.ShapeDtypeStruct((M, cout), jnp.bfloat16),
                   jax.ShapeDtypeStruct((nt, 1, cout), jnp.float32),
                   jax.ShapeDtypeStruct((nt, 1, cout), jnp.float32)),
        compiler_params=pltpu.CompilerParams(
            dimension_semantics=("parallel",),          # independent tiles -> megacore
            vmem_limit_bytes=VMEM_LIMIT),
    )(*args)


# ---------------------------------------------------------------------------
# Kernel B: bn1+ReLU on load -> 3x3 conv (per-image, zero-padded bf16 VMEM scratch,
#           paired K=256 MXU taps when C4p==128) -> per-image bn2 sum/sumsq.
# ---------------------------------------------------------------------------
def _conv3x3_stats_kernel(H, W, paired, h1_ref, sc_ref, sh_ref, w2_ref,
                          h2_ref, sum_ref, sq_ref, pad_ref):
    HW = H * W
    C = h1_ref.shape[2]
    Cout = h2_ref.shape[2]
    P = (pad_ref.shape[0] - HW) // 2          # halo band (static, >= W+1, 8-aligned)

    # bn1 folded affine + ReLU on load (f32); single cast into the bf16 scratch.
    a = jnp.maximum(h1_ref[0].astype(jnp.float32) * sc_ref[...] + sh_ref[...], 0.0)

    # Zero the halo bands every image: cheap vs. the interior, and required for
    # correctness under megacore "parallel" sharding (this core may never see image 0).
    halo = jnp.zeros((P, C), dtype=pad_ref.dtype)
    pad_ref[pl.ds(0, P), :] = halo
    pad_ref[pl.ds(P + HW, P), :] = halo
    pad_ref[pl.ds(P, HW), :] = a.astype(pad_ref.dtype)

    # Only the two column-edge masks are needed (vertical out-of-range reads always land
    # in the zero halo because P >= W + 1); computed once, reused by the dx!=0 taps.
    ww = lax.broadcasted_iota(jnp.int32, (HW, 1), 0) % W
    not_left = ww != 0                         # valid positions for dx = -1 taps
    not_right = ww != (W - 1)                  # valid positions for dx = +1 taps

    def tap(k):
        dy, dx = k // 3 - 1, k % 3 - 1
        win = pad_ref[pl.ds(P + dy * W + dx, HW), :]
        if dx == -1:
            win = jnp.where(not_left, win, jnp.zeros_like(win))
        elif dx == 1:
            win = jnp.where(not_right, win, jnp.zeros_like(win))
        return win

    acc = jnp.zeros((HW, Cout), jnp.float32)
    if paired:
        # K=256 dots keep the v6e/v7x MXU contraction dimension full; the single acc
        # chain lets v7x accumulate in the MRB.
        for i in range(4):
            lhs = jnp.concatenate([tap(2 * i), tap(2 * i + 1)], axis=1)
            acc = acc + jnp.dot(lhs, w2_ref[i], preferred_element_type=jnp.float32)
        acc = acc + jnp.dot(tap(8), w2_ref[4][:C, :],
                            preferred_element_type=jnp.float32)
    else:
        for k in range(9):
            acc = acc + jnp.dot(tap(k), w2_ref[k], preferred_element_type=jnp.float32)

    h2_ref[0] = acc.astype(h2_ref.dtype)
    sum_ref[0] = jnp.sum(acc, axis=0, keepdims=True)
    sq_ref[0] = jnp.sum(acc * acc, axis=0, keepdims=True)


def conv3x3_bn_stats(h1, scale, shift, w2, H, W, paired):
    N, HW, C = h1.shape
    Cout = w2.shape[-1]
    P = _round_up(W + 1, 8)                    # 8-aligned interior offset, >= W+1
    # TODO(synk): strip-tile over image rows (1-row halo) for very large H*W / channels
    # so per-step buffers stay well inside v7x's 64 MiB VMEM.
    return pl.pallas_call(
        functools.partial(_conv3x3_stats_kernel, H, W, paired),
        grid=(N,),
        in_specs=[_buffered_spec((1, HW, C), lambda n: (n, 0, 0), 3),
                  pl.BlockSpec((1, C), lambda n: (0, 0)),
                  pl.BlockSpec((1, C), lambda n: (0, 0)),
                  pl.BlockSpec(w2.shape, lambda n: (0, 0, 0))],
        out_specs=(pl.BlockSpec((1, HW, Cout), lambda n: (n, 0, 0)),
                   pl.BlockSpec((1, 1, Cout), lambda n: (n, 0, 0)),
                   pl.BlockSpec((1, 1, Cout), lambda n: (n, 0, 0))),
        out_shape=(jax.ShapeDtypeStruct((N, HW, Cout), jnp.bfloat16),
                   jax.ShapeDtypeStruct((N, 1, Cout), jnp.float32),
                   jax.ShapeDtypeStruct((N, 1, Cout), jnp.float32)),
        scratch_shapes=[pltpu.VMEM((HW + 2 * P, C), jnp.bfloat16)],
        compiler_params=pltpu.CompilerParams(
            dimension_semantics=("parallel",),
            vmem_limit_bytes=VMEM_LIMIT),
    )(h1, scale.astype(jnp.float32), shift.astype(jnp.float32), w2)


# ---------------------------------------------------------------------------
# Kernel D: final bn3 (folded affine) + residual + ReLU, independent tiles.
# ---------------------------------------------------------------------------
def _bn_residual_relu_kernel(h_ref, sc_ref, sh_ref, res_ref, o_ref):
    out = (h_ref[...].astype(jnp.float32) * sc_ref[...] + sh_ref[...]
           + res_ref[...].astype(jnp.float32))
    o_ref[...] = jnp.maximum(out, 0.0).astype(o_ref.dtype)


def bn_residual_relu(h, scale, shift, res, *, tm):
    M, C = h.shape
    return pl.pallas_call(
        _bn_residual_relu_kernel,
        grid=(M // tm,),
        in_specs=[pl.BlockSpec((tm, C), lambda i: (i, 0)),
                  pl.BlockSpec((1, C), lambda i: (0, 0)),
                  pl.BlockSpec((1, C), lambda i: (0, 0)),
                  pl.BlockSpec((tm, C), lambda i: (i, 0))],
        out_specs=pl.BlockSpec((tm, C), lambda i: (i, 0)),
        out_shape=jax.ShapeDtypeStruct((M, C), jnp.bfloat16),   # bf16 store: half HBM
        compiler_params=pltpu.CompilerParams(
            dimension_semantics=("parallel",),
            vmem_limit_bytes=VMEM_LIMIT),
    )(h, scale.astype(jnp.float32), shift.astype(jnp.float32), res)


# ---------------------------------------------------------------------------
# Wrapper glue
# ---------------------------------------------------------------------------
def _fold_bn(sum_parts, sq_parts, count, gamma, beta):
    """Reduce per-tile partials; fold biased-variance BN into one per-channel affine."""
    s = jnp.sum(sum_parts, axis=(0, 1))
    q = jnp.sum(sq_parts, axis=(0, 1))
    mean = s / count
    var = jnp.maximum(q / count - mean * mean, 0.0)
    scale = gamma * lax.rsqrt(var + EPS)
    shift = beta - mean * scale
    return scale.reshape(1, -1), shift.reshape(1, -1)


def init_resblock_params(key, in_channel):
    """Deterministic synthetic parameters (shapes match the PyTorch module)."""
    c = in_channel
    c4 = c // 4
    ks = jax.random.split(key, 9)
    p = {}
    p["w1"] = 0.1 * jax.random.normal(ks[0], (c4, c, 1, 1), jnp.float32)   # conv1x1, OIHW
    p["w2"] = 0.1 * jax.random.normal(ks[1], (c4, c4, 3, 3), jnp.float32)  # conv3x3, OIHW
    p["w3"] = 0.1 * jax.random.normal(ks[2], (c, c4, 1, 1), jnp.float32)   # conv1x1, OIHW
    p["g1"] = 1.0 + 0.1 * jax.random.normal(ks[3], (c4,), jnp.float32)
    p["b1"] = 0.1 * jax.random.normal(ks[4], (c4,), jnp.float32)
    p["g2"] = 1.0 + 0.1 * jax.random.normal(ks[5], (c4,), jnp.float32)
    p["b2"] = 0.1 * jax.random.normal(ks[6], (c4,), jnp.float32)
    p["g3"] = 1.0 + 0.1 * jax.random.normal(ks[7], (c,), jnp.float32)
    p["b3"] = 0.1 * jax.random.normal(ks[8], (c,), jnp.float32)
    return p


def resblock_forward_pallas(x_nchw, p):
    N, C, H, W = x_nchw.shape
    C4 = C // 4
    HW = H * W
    M = N * HW
    C4p = _round_up(C4, LANE)     # lane-dense intermediate channel width
    Cp = _round_up(C, LANE)       # lane-dense output channel width
    TM, Mp = _choose_rows(M, ROW_TILE_CAP)
    valid = M if Mp != M else None

    # Glue: NCHW -> NHWC-flattened (M, C); the bf16 copy feeds the MXU and also serves
    # directly as the residual (no fresh f32 padded tensor for the epilogue).
    x2d = jnp.transpose(x_nchw, (0, 2, 3, 1)).reshape(M, C)
    x_bf = x2d.astype(jnp.bfloat16)

    # Weights reshaped for NHWC GEMMs, zero-padded to lane-dense widths, bf16.
    w1 = jnp.zeros((C, C4p), jnp.float32).at[:, :C4].set(p["w1"].reshape(C4, C).T)
    w3 = jnp.zeros((C4p, Cp), jnp.float32).at[:C4, :C].set(p["w3"].reshape(C, C4).T)
    w2_taps = jnp.zeros((9, C4p, C4p), jnp.float32).at[:, :C4, :C4].set(
        jnp.transpose(p["w2"], (2, 3, 1, 0)).reshape(9, C4, C4))   # tap k=ky*3+kx, (ci,co)
    paired = C4p == LANE
    if paired:
        # Pack taps two-per-dot (K=256) for the 256-wide v6e/v7x MXU; slot 4 holds the
        # lone 9th tap in its first half (second half never read).
        w2 = jnp.concatenate(
            [jnp.concatenate([w2_taps[0:8:2], w2_taps[1:8:2]], axis=1),
             jnp.concatenate([w2_taps[8:9], jnp.zeros_like(w2_taps[8:9])], axis=1)],
            axis=0)                                                # (5, 2*C4p, C4p)
    else:
        w2 = w2_taps
    w1, w2, w3 = (w.astype(jnp.bfloat16) for w in (w1, w2, w3))
    g1, b1 = _pad_vec(p["g1"], C4p), _pad_vec(p["b1"], C4p)
    g2, b2 = _pad_vec(p["g2"], C4p), _pad_vec(p["b2"], C4p)
    g3, b3 = _pad_vec(p["g3"], Cp), _pad_vec(p["b3"], Cp)

    # Stage 1: conv1x1 GEMM + bn1 per-tile statistics.
    h1, s1, q1 = gemm_bn_stats(_pad_rows(x_bf, Mp), w1, tm=TM, valid_rows=valid)
    sc1, sh1 = _fold_bn(s1, q1, M, g1, b1)

    # Stage 2: (bn1+ReLU on load) -> 3x3 conv with in-VMEM halo + bn2 statistics.
    h2, s2, q2 = conv3x3_bn_stats(h1[:M].reshape(N, HW, C4p), sc1, sh1, w2, H, W, paired)
    sc2, sh2 = _fold_bn(s2, q2, M, g2, b2)

    # Stage 3: (bn2+ReLU on load) -> conv1x1 GEMM + bn3 statistics.
    h3, s3, q3 = gemm_bn_stats(_pad_rows(h2.reshape(M, C4p), Mp), w3,
                               scale=sc2, shift=sh2, tm=TM, valid_rows=valid)
    sc3, sh3 = _fold_bn(s3, q3, M, g3, b3)

    # Stage 4: bn3 + residual + ReLU (bf16 residual, bf16 store; channel-pad the residual
    # only when the output width is not already lane-dense).
    res = x_bf if Cp == C else jnp.zeros((M, Cp), jnp.bfloat16).at[:, :C].set(x_bf)
    out = bn_residual_relu(h3, sc3, sh3, _pad_rows(res, Mp), tm=TM)

    out = out[:M, :C].astype(jnp.float32).reshape(N, H, W, C)
    return jnp.transpose(out, (0, 3, 1, 2))       # back to NCHW, f32


def resblock_forward_ref(x, p):
    """Pure-JAX f32 reference (same semantics as the PyTorch module)."""
    def conv(h, w, pad):
        return lax.conv_general_dilated(
            h, w, (1, 1), pad, dimension_numbers=("NCHW", "OIHW", "NCHW"))

    def bn(h, g, b):
        mean = jnp.mean(h, axis=(0, 2, 3), keepdims=True)
        var = jnp.mean(jnp.square(h - mean), axis=(0, 2, 3), keepdims=True)
        return ((h - mean) * lax.rsqrt(var + EPS) * g.reshape(1, -1, 1, 1)
                + b.reshape(1, -1, 1, 1))

    relu = lambda h: jnp.maximum(h, 0.0)
    out = relu(bn(conv(x, p["w1"], "VALID"), p["g1"], p["b1"]))
    out = relu(bn(conv(out, p["w2"], [(1, 1), (1, 1)]), p["g2"], p["b2"]))
    out = bn(conv(out, p["w3"], "VALID"), p["g3"], p["b3"]) + x
    return relu(out)


if __name__ == "__main__":
    key = jax.random.PRNGKey(0)
    kx, kp = jax.random.split(key)

    N, C, H, W = 8, 32, 16, 16          # small shapes; in_channel divisible by 4
    x = jax.random.normal(kx, (N, C, H, W), jnp.float32)
    params = init_resblock_params(kp, C)

    out = jax.block_until_ready(resblock_forward_pallas(x, params))
    ref = resblock_forward_ref(x, params)

    assert out.shape == x.shape and out.dtype == jnp.float32
    err = jnp.abs(out - ref)
    max_err = float(jnp.max(err))
    mean_err = float(jnp.mean(err))
    # bf16 MXU operands, bf16 intermediates/residual/output store vs an all-f32 reference
    # (BN stats come from f32 accumulation but are applied to bf16-rounded activations —
    #  a small, documented systematic mismatch covered by this tolerance).
    assert max_err < 0.2 and mean_err < 0.04, f"max_err={max_err} mean_err={mean_err}"

    print("KERNEL_OK")
</pallas_src>

<mosaic_0001>
module attributes {stable_mosaic.version = 11 : i64} {
  func.func @_gemm_stats_kernel(%arg0: i32, %arg1: memref<1024x32xbf16, #tpu.memory_space<vmem>>, %arg2: memref<32x128xbf16, #tpu.memory_space<vmem>>, %arg3: memref<1024x128xbf16, #tpu.memory_space<vmem>>, %arg4: memref<1x1x128xf32, #tpu.memory_space<vmem>>, %arg5: memref<1x1x128xf32, #tpu.memory_space<vmem>>) attributes {dimension_semantics = [#tpu.dimension_semantics<parallel>], iteration_bounds = array<i64: 2>, scalar_prefetch = 0 : i64, scratch_operands = 0 : i64, tpu.core_type = #tpu.core_type<tc>, window_params = [{transform_indices = @transform_0, window_bounds = array<i64: 1024, 32>}, {pipeline_mode = #tpu.pipeline_mode<synchronous>, transform_indices = @transform_1, window_bounds = array<i64: 32, 128>}, {transform_indices = @transform_2, window_bounds = array<i64: 1024, 128>}, {transform_indices = @transform_3, window_bounds = array<i64: 1, 1, 128>}, {transform_indices = @transform_4, window_bounds = array<i64: 1, 1, 128>}]} {
    %c0 = arith.constant 0 : index
    %c0_0 = arith.constant 0 : index
    %0 = vector.load %arg1[%c0, %c0_0] : memref<1024x32xbf16, #tpu.memory_space<vmem>>, vector<1024x32xbf16>
    %c0_1 = arith.constant 0 : index
    %c0_2 = arith.constant 0 : index
    %1 = vector.load %arg2[%c0_1, %c0_2] : memref<32x128xbf16, #tpu.memory_space<vmem>>, vector<32x128xbf16>
    %cst = arith.constant dense<0.000000e+00> : vector<1024x128xf32>
    %2 = tpu.matmul %0, %1, %cst {dimension_numbers = #tpu.dot_dimension_numbers<[1], [0], [0], [1], [0, 0, 1, 1], [], []>} : vector<1024x32xbf16>, vector<32x128xbf16>, vector<1024x128xf32> -> vector<1024x128xf32>
    %3 = arith.truncf %2 : vector<1024x128xf32> to vector<1024x128xbf16>
    %c0_3 = arith.constant 0 : index
    %c0_4 = arith.constant 0 : index
    %4 = vector.load %arg3[%c0_3, %c0_4] : memref<1024x128xbf16, #tpu.memory_space<vmem>>, vector<1024x128xbf16>
    tpu.vector_store %arg3[%c0_3, %c0_4], %3 {strides = array<i32>} : memref<1024x128xbf16, #tpu.memory_space<vmem>>, vector<1024x128xbf16>,
    %cst_5 = arith.constant dense<0.000000e+00> : vector<128xf32>
    %5 = vector.multi_reduction <add>, %2, %cst_5 [0] : vector<1024x128xf32> to vector<128xf32>
    %6 = vector.shape_cast %5 : vector<128xf32> to vector<1x128xf32>
    %c0_6 = arith.constant 0 : index
    %c0_7 = arith.constant 0 : index
    %c0_8 = arith.constant 0 : index
    %7 = vector.load %arg4[%c0_6, %c0_7, %c0_8] : memref<1x1x128xf32, #tpu.memory_space<vmem>>, vector<1x1x128xf32>
    %8 = vector.shape_cast %7 : vector<1x1x128xf32> to vector<1x128xf32>
    %9 = vector.shape_cast %6 : vector<1x128xf32> to vector<1x1x128xf32>
    tpu.vector_store %arg4[%c0_6, %c0_7, %c0_8], %9 {strides = array<i32>} : memref<1x1x128xf32, #tpu.memory_space<vmem>>, vector<1x1x128xf32>,
    %10 = arith.mulf %2, %2 : vector<1024x128xf32>
    %cst_9 = arith.constant dense<0.000000e+00> : vector<128xf32>
    %11 = vector.multi_reduction <add>, %10, %cst_9 [0] : vector<1024x128xf32> to vector<128xf32>
    %12 = vector.shape_cast %11 : vector<128xf32> to vector<1x128xf32>
    %c0_10 = arith.constant 0 : index
    %c0_11 = arith.constant 0 : index
    %c0_12 = arith.constant 0 : index
    %13 = vector.load %arg5[%c0_10, %c0_11, %c0_12] : memref<1x1x128xf32, #tpu.memory_space<vmem>>, vector<1x1x128xf32>
    %14 = vector.shape_cast %13 : vector<1x1x128xf32> to vector<1x128xf32>
    %15 = vector.shape_cast %12 : vector<1x128xf32> to vector<1x1x128xf32>
    tpu.vector_store %arg5[%c0_10, %c0_11, %c0_12], %15 {strides = array<i32>} : memref<1x1x128xf32, #tpu.memory_space<vmem>>, vector<1x1x128xf32>,
    return
  }
  func.func @transform_0(%arg0: i32) -> (i32, i32) {
    %c0_i32 = arith.constant 0 : i32
    %c0_i32_0 = arith.constant 0 : i32
    return %arg0, %c0_i32 : i32, i32
  }
  func.func @transform_1(%arg0: i32) -> (i32, i32) {
    %c0_i32 = arith.constant 0 : i32
    %c0_i32_0 = arith.constant 0 : i32
    %c0_i32_1 = arith.constant 0 : i32
    return %c0_i32, %c0_i32_0 : i32, i32
  }
  func.func @transform_2(%arg0: i32) -> (i32, i32) {
    %c0_i32 = arith.constant 0 : i32
    %c0_i32_0 = arith.constant 0 : i32
    return %arg0, %c0_i32 : i32, i32
  }
  func.func @transform_3(%arg0: i32) -> (i32, i32, i32) {
    %c0_i32 = arith.constant 0 : i32
    %c0_i32_0 = arith.constant 0 : i32
    %c0_i32_1 = arith.constant 0 : i32
    return %arg0, %c0_i32, %c0_i32_0 : i32, i32, i32
  }
  func.func @transform_4(%arg0: i32) -> (i32, i32, i32) {
    %c0_i32 = arith.constant 0 : i32
    %c0_i32_0 = arith.constant 0 : i32
    %c0_i32_1 = arith.constant 0 : i32
    return %arg0, %c0_i32, %c0_i32_0 : i32, i32, i32
  }
}

</mosaic_0001>

<llo_original>
// kernel: tpu_custom_call.1
$region0: #{tpu_custom_call.1}
  #allocation0 [shape = 'u32[]', space=smem, size = 0x4, offset = 0x4, fixed_abs, tag = 'smem constant byte address 0x4 - core index']
  #allocation1 [shape = 'u32[72,128]{1,0:T(1,128)}', space=vmem, size = 0x9000, scoped, tag = 'internal scratch']
  %s0 = inlined_call_operand.vmem [shape: bf16[2048,32], index: 0, kind: input, shape index: {}]
  %s1 = inlined_call_operand.vmem [shape: bf16[32,128], index: 1, kind: input, shape index: {}]
  %s2 = inlined_call_operand.hbm [shape: bf16[2048,128], index: 2, kind: output, shape index: {0}]
  %s3 = inlined_call_operand.hbm [shape: f32[2,1,128], index: 3, kind: output, shape index: {1}]
  %s4 = inlined_call_operand.hbm [shape: f32[2,1,128], index: 4, kind: output, shape index: {2}]
  %5 = xla_tuple %s2, %s3, %s4
  %s6 = sld [smem:[#allocation0]]
  $region57: #{tpu_custom_call.1} parent=0
    _
  %s8 = ssub.s32 1, %s6
  %s9 = scalar_select 0, %s8, %s6
  $region1: #{tpu_custom_call.1} parent=0
    #allocation2 [shape = 'u8[524288]{0}', space=vmem, size = 0x80000, scoped, tag = 'output window, operand 0']
    #allocation3 [shape = 's32[2]{0}', space=sflag, size = 0x8, scoped, tag = 'scoped memory for tpu_custom_call.1']
    #allocation4 [shape = 'u8[1024]{0}', space=vmem, size = 0x400, scoped, tag = 'output window, operand 1']
    #allocation5 [shape = 's32[2]{0}', space=sflag, size = 0x8, scoped, tag = 'scoped memory for tpu_custom_call.1']
    #allocation6 [shape = 'u8[1024]{0}', space=vmem, size = 0x400, scoped, tag = 'output window, operand 2']
    %10 = vsyncpa [#allocation3], 0
    %s11 = scalar_lea.sflag [#allocation3], 1
    %12 = vsyncpa %s11, 0
    %13 = vsyncpa [#allocation5], 0
    %s14 = scalar_lea.sflag [#allocation5], 1
    %15 = vsyncpa %s14, 0
    loop: start=0, step=1, limit=4
    $region2: #{tpu_custom_call.1} parent=1 // loop_pre_header
      _
    $region3: #{tpu_custom_call.1} parent=1 // loop_header
      %s17 = sphi 0, %s21
      %p18 = scmp.ge.s32.totalorder %s17, 4
      %s27 = sphi 0, %s29
      %s30 = sphi 0, %s27
      %s31 = sphi 0, %s30
      %s47 = sphi 0, %s31
      %s51 = sphi 0, %s51
      %s53 = sphi 0, %s51
      %s54 = sphi 0, %s53
      %s68 = sphi 0, %s54
      %s74 = sphi 0, %s76
      %s77 = sphi 0, %s74
      %s78 = sphi 0, %s77
      %s94 = sphi 0, %s78
      %s100 = sphi 0, %s102
      %s103 = sphi 0, %s100
      %s104 = sphi 0, %s103
      %s120 = sphi 0, %s104
      %s126 = sphi 0, %s128
      %s129 = sphi 0, %s126
      %s130 = sphi 0, %s129
      %s146 = sphi 0, %s130
    $region4: #{tpu_custom_call.1} parent=1 // loop_header_branch
      %20 = sbr.rel (%p18) target = $region8
    $region5: #{tpu_custom_call.1} parent=1 // loop_body
      %s22 = ssub.s32 %s17, 1
      %s23 = ssub.s32 %s17, 2
      %s24 = sadd.s32 %s17, 1
      %s25 = ssub.s32 %s17, %s24
      %p26 = scmp.eq.s32.totalorder %s25, 0
      %s28 = sadd.s32 %s27, 1
      %s29 = scalar_select %p26, %s27, %s28
      %p32 = pneg %p26
      %p33 = scmp.eq.s32.totalorder %s17, 1
      %p34 = por %p32, %p33
      %p35 = scmp.ne.s32.totalorder %s27, %s30
      %p36 = scmp.eq.s32.totalorder %s17, 0
      %p37 = por %p35, %p36
      %p38 = scmp.ne.s32.totalorder %s27, %s30
      %p39 = scmp.eq.s32.totalorder %s22, 1
      %p40 = por %p38, %p39
      %p41 = scmp.ne.s32.totalorder %s30, %s31
      %p42 = scmp.eq.s32.totalorder %s22, 0
      %p43 = por %p41, %p42
      %p44 = scmp.ne.s32.totalorder %s30, %s31
      %p45 = scmp.eq.s32.totalorder %s23, 1
      %p46 = por %p44, %p45
      %p48 = scmp.ne.s32.totalorder %s31, %s47
      %p49 = scmp.eq.s32.totalorder %s23, 0
      %p50 = por %p48, %p49
      %s52 = sadd.s32 %s51, 1
      %p55 = scmp.eq.s32.totalorder %s17, 1
      %p56 = scmp.ne.s32.totalorder %s51, %s53
      %p57 = scmp.eq.s32.totalorder %s17, 0
      %p58 = por %p56, %p57
      %p59 = scmp.ne.s32.totalorder %s51, %s53
      %p60 = scmp.eq.s32.totalorder %s22, 1
      %p61 = por %p59, %p60
      %p62 = scmp.ne.s32.totalorder %s53, %s54
      %p63 = scmp.eq.s32.totalorder %s22, 0
      %p64 = por %p62, %p63
      %p65 = scmp.ne.s32.totalorder %s53, %s54
      %p66 = scmp.eq.s32.totalorder %s23, 1
      %p67 = por %p65, %p66
      %p69 = scmp.ne.s32.totalorder %s54, %s68
      %p70 = scmp.eq.s32.totalorder %s23, 0
      %p71 = por %p69, %p70
      %s72 = ssub.s32 %s17, %s24
      %p73 = scmp.eq.s32.totalorder %s72, 0
      %s75 = sadd.s32 %s74, 1
      %s76 = scalar_select %p73, %s74, %s75
      %p79 = pneg %p73
      %p80 = scmp.eq.s32.totalorder %s17, 1
      %p81 = por %p79, %p80
      %p82 = scmp.ne.s32.totalorder %s74, %s77
      %p83 = scmp.eq.s32.totalorder %s17, 0
      %p84 = por %p82, %p83
      %p85 = scmp.ne.s32.totalorder %s74, %s77
      %p86 = scmp.eq.s32.totalorder %s22, 1
      %p87 = por %p85, %p86
      %p88 = scmp.ne.s32.totalorder %s77, %s78
      %p89 = scmp.eq.s32.totalorder %s22, 0
      %p90 = por %p88, %p89
      %p91 = scmp.ne.s32.totalorder %s77, %s78
      %p92 = scmp.eq.s32.totalorder %s23, 1
      %p93 = por %p91, %p92
      %p95 = scmp.ne.s32.totalorder %s78, %s94
      %p96 = scmp.eq.s32.totalorder %s23, 0
      %p97 = por %p95, %p96
      %s98 = ssub.s32 %s17, %s24
      %p99 = scmp.eq.s32.totalorder %s98, 0
      %s101 = sadd.s32 %s100, 1
      %s102 = scalar_select %p99, %s100, %s101
      %p105 = pneg %p99
      %p106 = scmp.eq.s32.totalorder %s17, 1
      %p107 = por %p105, %p106
      %p108 = scmp.ne.s32.totalorder %s100, %s103
      %p109 = scmp.eq.s32.totalorder %s17, 0
      %p110 = por %p108, %p109
      %p111 = scmp.ne.s32.totalorder %s100, %s103
      %p112 = scmp.eq.s32.totalorder %s22, 1
      %p113 = por %p111, %p112
      %p114 = scmp.ne.s32.totalorder %s103, %s104
      %p115 = scmp.eq.s32.totalorder %s22, 0
      %p116 = por %p114, %p115
      %p117 = scmp.ne.s32.totalorder %s103, %s104
      %p118 = scmp.eq.s32.totalorder %s23, 1
      %p119 = por %p117, %p118
      %p121 = scmp.ne.s32.totalorder %s104, %s120
      %p122 = scmp.eq.s32.totalorder %s23, 0
      %p123 = por %p121, %p122
      %s124 = ssub.s32 %s17, %s24
      %p125 = scmp.eq.s32.totalorder %s124, 0
      %s127 = sadd.s32 %s126, 1
      %s128 = scalar_select %p125, %s126, %s127
      %p131 = pneg %p125
      %p132 = scmp.eq.s32.totalorder %s17, 1
      %p133 = por %p131, %p132
      %p134 = scmp.ne.s32.totalorder %s126, %s129
      %p135 = scmp.eq.s32.totalorder %s17, 0
      %p136 = por %p134, %p135
      %p137 = scmp.ne.s32.totalorder %s126, %s129
      %p138 = scmp.eq.s32.totalorder %s22, 1
      %p139 = por %p137, %p138
      %p140 = scmp.ne.s32.totalorder %s129, %s130
      %p141 = scmp.eq.s32.totalorder %s22, 0
      %p142 = por %p140, %p141
      %p143 = scmp.ne.s32.totalorder %s129, %s130
      %p144 = scmp.eq.s32.totalorder %s23, 1
      %p145 = por %p143, %p144
      %p147 = scmp.ne.s32.totalorder %s130, %s146
      %p148 = scmp.eq.s32.totalorder %s23, 0
      %p149 = por %p147, %p148
      %p150 = scmp.le.s32.totalorder 1, %s17
      %p151 = scmp.lt.s32.totalorder %s17, 3
      %p152 = pnand %p150, %p151
      %p153 = pneg %p152
      // Predicated region
      $region9: #{tpu_custom_call.1} parent=5 // pred_check
        _
      $region10: #{tpu_custom_call.1} parent=5 // pred_check_branch
        %155 = sbr.rel (%p152) target = $region12
      $region11: #{tpu_custom_call.1} parent=5 // pred_region
        %s156 = ssub.s32 %s17, 1
        // Predicated region
        $region13: #{tpu_custom_call.1} parent=11 // pred_check
          %p157 = pneg %p64
        $region14: #{tpu_custom_call.1} parent=11 // pred_check_branch
          %159 = sbr.rel (%p157) target = $region16
        $region15: #{tpu_custom_call.1} parent=11 // pred_region
          _
        $region16: #{tpu_custom_call.1} parent=11 // pred_fallthru
          _
      $region12: #{tpu_custom_call.1} parent=5 // pred_fallthru
        _
      %p160 = scmp.lt.s32.totalorder %s17, 2
      // Predicated region
      $region17: #{tpu_custom_call.1} parent=5 // pred_check
        %p161 = pneg %p160
      $region18: #{tpu_custom_call.1} parent=5 // pred_check_branch
        %163 = sbr.rel (%p161) target = $region20
      $region19: #{tpu_custom_call.1} parent=5 // pred_region
        // Predicated region
        $region21: #{tpu_custom_call.1} parent=19 // pred_check
          %p164 = pneg %p37
        $region22: #{tpu_custom_call.1} parent=19 // pred_check_branch
          %166 = sbr.rel (%p164) target = $region24
        $region23: #{tpu_custom_call.1} parent=19 // pred_region
          %s167 = smul.u32 128, %s17
          %p168 = scmp.lt.s32.totalorder %s167, 255
          %s169 = scalar_select %p168, %s167, 255
          %s170 = smul.addr %s169, 4
          %s171 = scalar_lea.vmem %s0, %s170
          %s172 = smul.u32 128, %s17
        $region24: #{tpu_custom_call.1} parent=19 // pred_fallthru
          _
      $region20: #{tpu_custom_call.1} parent=5 // pred_fallthru
        _
      %p173 = scmp.le.s32.totalorder 1, %s17
      %p174 = scmp.lt.s32.totalorder %s17, 3
      %p175 = pnand %p173, %p174
      %p176 = pneg %p175
      // Predicated region
      $region25: #{tpu_custom_call.1} parent=5 // pred_check
        _
      $region26: #{tpu_custom_call.1} parent=5 // pred_check_branch
        %178 = sbr.rel (%p175) target = $region28
      $region27: #{tpu_custom_call.1} parent=5 // pred_region
        %s179 = ssub.s32 %s17, 1
        %s180 = smul.u32 128, %s22
        %p181 = scmp.lt.s32.totalorder %s180, 255
        %s182 = scalar_select %p181, %s180, 255
        %s183 = smul.addr %s182, 4
        %s184 = scalar_lea.vmem %s0, %s183
        %p185 = pneg %p43
        %p186 = pneg %p40
        %p187 = pneg %p64
        %p188 = pneg %p61
        %p189 = pneg %p90
        %p190 = pneg %p87
        %s191 = sand.u32 %s77, 1
        %s192 = scalar_lea.sflag [#allocation3], %s191
        %s193 = sand.u32 %s77, 1
        %s194 = smul.addr %s193, 512
        %s195 = scalar_lea.vmem [#allocation2], %s194
        %p196 = pneg %p116
        %p197 = pneg %p113
        %s198 = sand.u32 %s22, 1
        %s199 = scalar_lea.sflag [#allocation5], %s198
        %s200 = sand.u32 %s103, 1
        %s201 = scalar_lea.vmem [#allocation4], %s200
        %p202 = pneg %p142
        %p203 = pneg %p139
        %s204 = sand.u32 %s22, 1
        %s205 = scalar_lea.sflag [#allocation5], %s204
        %s206 = sand.u32 %s129, 1
        %s207 = scalar_lea.vmem [#allocation6], %s206
        %s208 = smul.u32 128, %s22
        %p209 = scmp.lt.s32.totalorder %s208, 255
        %s210 = scalar_select %p209, %s208, 255
        %s211 = smul.addr %s210, 4
        %s212 = scalar_lea.vmem %s0, %s211
        %s213 = smul.u32 128, %s22
        %s214 = smul.u32 128, %s22
        %v216 = vld [vmem:[%s212] sm:$0xf]
        %v217 = vld [vmem:[%s212 + $0x4] sm:$0xf]
        %v218 = vld [vmem:[%s212 + $0x8] sm:$0xf]
        %v219 = vld [vmem:[%s212 + $0xc] sm:$0xf]
        %v220 = vld [vmem:[%s212 + $0x10] sm:$0xf]
        %v221 = vld [vmem:[%s212 + $0x14] sm:$0xf]
        %v222 = vld [vmem:[%s212 + $0x18] sm:$0xf]
        %v223 = vld [vmem:[%s212 + $0x1c] sm:$0xf]
        %v224 = vld [vmem:[%s212 + $0x20] sm:$0xf]
        %v225 = vld [vmem:[%s212 + $0x24] sm:$0xf]
        %v226 = vld [vmem:[%s212 + $0x28] sm:$0xf]
        %v227 = vld [vmem:[%s212 + $0x2c] sm:$0xf]
        %v228 = vld [vmem:[%s212 + $0x30] sm:$0xf]
        %v229 = vld [vmem:[%s212 + $0x34] sm:$0xf]
        %v230 = vld [vmem:[%s212 + $0x38] sm:$0xf]
        %v231 = vld [vmem:[%s212 + $0x3c] sm:$0xf]
        %v232 = vld [vmem:[%s212 + $0x40] sm:$0xf]
        %v233 = vld [vmem:[%s212 + $0x44] sm:$0xf]
        %v234 = vld [vmem:[%s212 + $0x48] sm:$0xf]
        %v235 = vld [vmem:[%s212 + $0x4c] sm:$0xf]
        %v236 = vld [vmem:[%s212 + $0x50] sm:$0xf]
        %v237 = vld [vmem:[%s212 + $0x54] sm:$0xf]
        %v238 = vld [vmem:[%s212 + $0x58] sm:$0xf]
        %v239 = vld [vmem:[%s212 + $0x5c] sm:$0xf]
        %v240 = vld [vmem:[%s212 + $0x60] sm:$0xf]
        %v241 = vld [vmem:[%s212 + $0x64] sm:$0xf]
        %v242 = vld [vmem:[%s212 + $0x68] sm:$0xf]
        %v243 = vld [vmem:[%s212 + $0x6c] sm:$0xf]
        %v244 = vld [vmem:[%s212 + $0x70] sm:$0xf]
        %v245 = vld [vmem:[%s212 + $0x74] sm:$0xf]
        %v246 = vld [vmem:[%s212 + $0x78] sm:$0xf]
        %v247 = vld [vmem:[%s212 + $0x7c] sm:$0xf]
        %v248 = vld [vmem:[%s212 + $0x80] sm:$0xf]
        %v249 = vld [vmem:[%s212 + $0x84] sm:$0xf]
        %v250 = vld [vmem:[%s212 + $0x88] sm:$0xf]
        %v251 = vld [vmem:[%s212 + $0x8c] sm:$0xf]
        %v252 = vld [vmem:[%s212 + $0x90] sm:$0xf]
        %v253 = vld [vmem:[%s212 + $0x94] sm:$0xf]
        %v254 = vld [vmem:[%s212 + $0x98] sm:$0xf]
        %v255 = vld [vmem:[%s212 + $0x9c] sm:$0xf]
        %v256 = vld [vmem:[%s212 + $0xa0] sm:$0xf]
        %v257 = vld [vmem:[%s212 + $0xa4] sm:$0xf]
        %v258 = vld [vmem:[%s212 + $0xa8] sm:$0xf]
        %v259 = vld [vmem:[%s212 + $0xac] sm:$0xf]
        %v260 = vld [vmem:[%s212 + $0xb0] sm:$0xf]
        %v261 = vld [vmem:[%s212 + $0xb4] sm:$0xf]
        %v262 = vld [vmem:[%s212 + $0xb8] sm:$0xf]
        %v263 = vld [vmem:[%s212 + $0xbc] sm:$0xf]
        %v264 = vld [vmem:[%s212 + $0xc0] sm:$0xf]
        %v265 = vld [vmem:[%s212 + $0xc4] sm:$0xf]
        %v266 = vld [vmem:[%s212 + $0xc8] sm:$0xf]
        %v267 = vld [vmem:[%s212 + $0xcc] sm:$0xf]
        %v268 = vld [vmem:[%s212 + $0xd0] sm:$0xf]
        %v269 = vld [vmem:[%s212 + $0xd4] sm:$0xf]
        %v270 = vld [vmem:[%s212 + $0xd8] sm:$0xf]
        %v271 = vld [vmem:[%s212 + $0xdc] sm:$0xf]
        %v272 = vld [vmem:[%s212 + $0xe0] sm:$0xf]
        %v273 = vld [vmem:[%s212 + $0xe4] sm:$0xf]
        %v274 = vld [vmem:[%s212 + $0xe8] sm:$0xf]
        %v275 = vld [vmem:[%s212 + $0xec] sm:$0xf]
        %v276 = vld [vmem:[%s212 + $0xf0] sm:$0xf]
        %v277 = vld [vmem:[%s212 + $0xf4] sm:$0xf]
        %v278 = vld [vmem:[%s212 + $0xf8] sm:$0xf]
        %v279 = vld [vmem:[%s212 + $0xfc] sm:$0xf]
        %v280 = vld [vmem:[%s212 + $0x100] sm:$0xf]
        %v281 = vld [vmem:[%s212 + $0x104] sm:$0xf]
        %v282 = vld [vmem:[%s212 + $0x108] sm:$0xf]
        %v283 = vld [vmem:[%s212 + $0x10c] sm:$0xf]
        %v284 = vld [vmem:[%s212 + $0x110] sm:$0xf]
        %v285 = vld [vmem:[%s212 + $0x114] sm:$0xf]
        %v286 = vld [vmem:[%s212 + $0x118] sm:$0xf]
        %v287 = vld [vmem:[%s212 + $0x11c] sm:$0xf]
        %v288 = vld [vmem:[%s212 + $0x120] sm:$0xf]
        %v289 = vld [vmem:[%s212 + $0x124] sm:$0xf]
        %v290 = vld [vmem:[%s212 + $0x128] sm:$0xf]
        %v291 = vld [vmem:[%s212 + $0x12c] sm:$0xf]
        %v292 = vld [vmem:[%s212 + $0x130] sm:$0xf]
        %v293 = vld [vmem:[%s212 + $0x134] sm:$0xf]
        %v294 = vld [vmem:[%s212 + $0x138] sm:$0xf]
        %v295 = vld [vmem:[%s212 + $0x13c] sm:$0xf]
        %v296 = vld [vmem:[%s212 + $0x140] sm:$0xf]
        %v297 = vld [vmem:[%s212 + $0x144] sm:$0xf]
        %v298 = vld [vmem:[%s212 + $0x148] sm:$0xf]
        %v299 = vld [vmem:[%s212 + $0x14c] sm:$0xf]
        %v300 = vld [vmem:[%s212 + $0x150] sm:$0xf]
        %v301 = vld [vmem:[%s212 + $0x154] sm:$0xf]
        %v302 = vld [vmem:[%s212 + $0x158] sm:$0xf]
        %v303 = vld [vmem:[%s212 + $0x15c] sm:$0xf]
        %v304 = vld [vmem:[%s212 + $0x160] sm:$0xf]
        %v305 = vld [vmem:[%s212 + $0x164] sm:$0xf]
        %v306 = vld [vmem:[%s212 + $0x168] sm:$0xf]
        %v307 = vld [vmem:[%s212 + $0x16c] sm:$0xf]
        %v308 = vld [vmem:[%s212 + $0x170] sm:$0xf]
        %v309 = vld [vmem:[%s212 + $0x174] sm:$0xf]
        %v310 = vld [vmem:[%s212 + $0x178] sm:$0xf]
        %v311 = vld [vmem:[%s212 + $0x17c] sm:$0xf]
        %v312 = vld [vmem:[%s212 + $0x180] sm:$0xf]
        %v313 = vld [vmem:[%s212 + $0x184] sm:$0xf]
        %v314 = vld [vmem:[%s212 + $0x188] sm:$0xf]
        %v315 = vld [vmem:[%s212 + $0x18c] sm:$0xf]
        %v316 = vld [vmem:[%s212 + $0x190] sm:$0xf]
        %v317 = vld [vmem:[%s212 + $0x194] sm:$0xf]
        %v318 = vld [vmem:[%s212 + $0x198] sm:$0xf]
        %v319 = vld [vmem:[%s212 + $0x19c] sm:$0xf]
        %v320 = vld [vmem:[%s212 + $0x1a0] sm:$0xf]
        %v321 = vld [vmem:[%s212 + $0x1a4] sm:$0xf]
        %v322 = vld [vmem:[%s212 + $0x1a8] sm:$0xf]
        %v323 = vld [vmem:[%s212 + $0x1ac] sm:$0xf]
        %v324 = vld [vmem:[%s212 + $0x1b0] sm:$0xf]
        %v325 = vld [vmem:[%s212 + $0x1b4] sm:$0xf]
        %v326 = vld [vmem:[%s212 + $0x1b8] sm:$0xf]
        %v327 = vld [vmem:[%s212 + $0x1bc] sm:$0xf]
        %v328 = vld [vmem:[%s212 + $0x1c0] sm:$0xf]
        %v329 = vld [vmem:[%s212 + $0x1c4] sm:$0xf]
        %v330 = vld [vmem:[%s212 + $0x1c8] sm:$0xf]
        %v331 = vld [vmem:[%s212 + $0x1cc] sm:$0xf]
        %v332 = vld [vmem:[%s212 + $0x1d0] sm:$0xf]
        %v333 = vld [vmem:[%s212 + $0x1d4] sm:$0xf]
        %v334 = vld [vmem:[%s212 + $0x1d8] sm:$0xf]
        %v335 = vld [vmem:[%s212 + $0x1dc] sm:$0xf]
        %v336 = vld [vmem:[%s212 + $0x1e0] sm:$0xf]
        %v337 = vld [vmem:[%s212 + $0x1e4] sm:$0xf]
        %v338 = vld [vmem:[%s212 + $0x1e8] sm:$0xf]
        %v339 = vld [vmem:[%s212 + $0x1ec] sm:$0xf]
        %v340 = vld [vmem:[%s212 + $0x1f0] sm:$0xf]
        %v341 = vld [vmem:[%s212 + $0x1f4] sm:$0xf]
        %v342 = vld [vmem:[%s212 + $0x1f8] sm:$0xf]
        %v343 = vld [vmem:[%s212 + $0x1fc] sm:$0xf]
        %v344 = vld [vmem:[%s1] sm:$0xf]
        %v345 = vld [vmem:[%s1 + $0x4] sm:$0xf]
        %v346 = vld [vmem:[%s1 + $0x8] sm:$0xf]
        %v347 = vld [vmem:[%s1 + $0xc] sm:$0xf]
        %v476 = vunpack.c.l.b16 %v216
        %v477 = vunpack.c.l.b16 %v217
        %v478 = vunpack.c.l.b16 %v218
        %v479 = vunpack.c.l.b16 %v219
        %v480 = vunpack.c.l.b16 %v220
        %v481 = vunpack.c.l.b16 %v221
        %v482 = vunpack.c.l.b16 %v222
        %v483 = vunpack.c.l.b16 %v223
        %v484 = vunpack.c.l.b16 %v224
        %v485 = vunpack.c.l.b16 %v225
        %v486 = vunpack.c.l.b16 %v226
        %v487 = vunpack.c.l.b16 %v227
        %v488 = vunpack.c.l.b16 %v228
        %v489 = vunpack.c.l.b16 %v229
        %v490 = vunpack.c.l.b16 %v230
        %v491 = vunpack.c.l.b16 %v231
        %v492 = vunpack.c.l.b16 %v232
        %v493 = vunpack.c.l.b16 %v233
        %v494 = vunpack.c.l.b16 %v234
        %v495 = vunpack.c.l.b16 %v235
        %v496 = vunpack.c.l.b16 %v236
        %v497 = vunpack.c.l.b16 %v237
        %v498 = vunpack.c.l.b16 %v238
        %v499 = vunpack.c.l.b16 %v239
        %v500 = vunpack.c.l.b16 %v240
        %v501 = vunpack.c.l.b16 %v241
        %v502 = vunpack.c.l.b16 %v242
        %v503 = vunpack.c.l.b16 %v243
        %v504 = vunpack.c.l.b16 %v244
        %v505 = vunpack.c.l.b16 %v245
        %v506 = vunpack.c.l.b16 %v246
        %v507 = vunpack.c.l.b16 %v247
        %v508 = vunpack.c.l.b16 %v248
        %v509 = vunpack.c.l.b16 %v249
        %v510 = vunpack.c.l.b16 %v250
        %v511 = vunpack.c.l.b16 %v251
        %v512 = vunpack.c.l.b16 %v252
        %v513 = vunpack.c.l.b16 %v253
        %v514 = vunpack.c.l.b16 %v254
        %v515 = vunpack.c.l.b16 %v255
        %v516 = vunpack.c.l.b16 %v256
        %v517 = vunpack.c.l.b16 %v257
        %v518 = vunpack.c.l.b16 %v258
        %v519 = vunpack.c.l.b16 %v259
        %v520 = vunpack.c.l.b16 %v260
        %v521 = vunpack.c.l.b16 %v261
        %v522 = vunpack.c.l.b16 %v262
        %v523 = vunpack.c.l.b16 %v263
        %v524 = vunpack.c.l.b16 %v264
        %v525 = vunpack.c.l.b16 %v265
        %v526 = vunpack.c.l.b16 %v266
        %v527 = vunpack.c.l.b16 %v267
        %v528 = vunpack.c.l.b16 %v268
        %v529 = vunpack.c.l.b16 %v269
        %v530 = vunpack.c.l.b16 %v270
        %v531 = vunpack.c.l.b16 %v271
        %v532 = vunpack.c.l.b16 %v272
        %v533 = vunpack.c.l.b16 %v273
        %v534 = vunpack.c.l.b16 %v274
        %v535 = vunpack.c.l.b16 %v275
        %v536 = vunpack.c.l.b16 %v276
        %v537 = vunpack.c.l.b16 %v277
        %v538 = vunpack.c.l.b16 %v278
        %v539 = vunpack.c.l.b16 %v279
        %v540 = vunpack.c.l.b16 %v280
        %v541 = vunpack.c.l.b16 %v281
        %v542 = vunpack.c.l.b16 %v282
        %v543 = vunpack.c.l.b16 %v283
        %v544 = vunpack.c.l.b16 %v284
        %v545 = vunpack.c.l.b16 %v285
        %v546 = vunpack.c.l.b16 %v286
        %v547 = vunpack.c.l.b16 %v287
        %v548 = vunpack.c.l.b16 %v288
        %v549 = vunpack.c.l.b16 %v289
        %v550 = vunpack.c.l.b16 %v290
        %v551 = vunpack.c.l.b16 %v291
        %v552 = vunpack.c.l.b16 %v292
        %v553 = vunpack.c.l.b16 %v293
        %v554 = vunpack.c.l.b16 %v294
        %v555 = vunpack.c.l.b16 %v295
        %v556 = vunpack.c.l.b16 %v296
        %v557 = vunpack.c.l.b16 %v297
        %v558 = vunpack.c.l.b16 %v298
        %v559 = vunpack.c.l.b16 %v299
        %v560 = vunpack.c.l.b16 %v300
        %v561 = vunpack.c.l.b16 %v301
        %v562 = vunpack.c.l.b16 %v302
        %v563 = vunpack.c.l.b16 %v303
        %v564 = vunpack.c.l.b16 %v304
        %v565 = vunpack.c.l.b16 %v305
        %v566 = vunpack.c.l.b16 %v306
        %v567 = vunpack.c.l.b16 %v307
        %v568 = vunpack.c.l.b16 %v308
        %v569 = vunpack.c.l.b16 %v309
        %v570 = vunpack.c.l.b16 %v310
        %v571 = vunpack.c.l.b16 %v311
        %v572 = vunpack.c.l.b16 %v312
        %v573 = vunpack.c.l.b16 %v313
        %v574 = vunpack.c.l.b16 %v314
        %v575 = vunpack.c.l.b16 %v315
        %v576 = vunpack.c.l.b16 %v316
        %v577 = vunpack.c.l.b16 %v317
        %v578 = vunpack.c.l.b16 %v318
        %v579 = vunpack.c.l.b16 %v319
        %v580 = vunpack.c.l.b16 %v320
        %v581 = vunpack.c.l.b16 %v321
        %v582 = vunpack.c.l.b16 %v322
        %v583 = vunpack.c.l.b16 %v323
        %v584 = vunpack.c.l.b16 %v324
        %v585 = vunpack.c.l.b16 %v325
        %v586 = vunpack.c.l.b16 %v326
        %v587 = vunpack.c.l.b16 %v327
        %v588 = vunpack.c.l.b16 %v328
        %v589 = vunpack.c.l.b16 %v329
        %v590 = vunpack.c.l.b16 %v330
        %v591 = vunpack.c.l.b16 %v331
        %v592 = vunpack.c.l.b16 %v332
        %v593 = vunpack.c.l.b16 %v333
        %v594 = vunpack.c.l.b16 %v334
        %v595 = vunpack.c.l.b16 %v335
        %v596 = vunpack.c.l.b16 %v336
        %v597 = vunpack.c.l.b16 %v337
        %v598 = vunpack.c.l.b16 %v338
        %v599 = vunpack.c.l.b16 %v339
        %v600 = vunpack.c.l.b16 %v340
        %v601 = vunpack.c.l.b16 %v341
        %v602 = vunpack.c.l.b16 %v342
        %v603 = vunpack.c.l.b16 %v343
        %v604 = vpack.c.b16 %v477, %v476
        %v605 = vpack.c.b16 %v479, %v478
        %v606 = vpack.c.b16 %v481, %v480
        %v607 = vpack.c.b16 %v483, %v482
        %v608 = vpack.c.b16 %v485, %v484
        %v609 = vpack.c.b16 %v487, %v486
        %v610 = vpack.c.b16 %v489, %v488
        %v611 = vpack.c.b16 %v491, %v490
        %v612 = vpack.c.b16 %v493, %v492
        %v613 = vpack.c.b16 %v495, %v494
        %v614 = vpack.c.b16 %v497, %v496
        %v615 = vpack.c.b16 %v499, %v498
        %v616 = vpack.c.b16 %v501, %v500
        %v617 = vpack.c.b16 %v503, %v502
        %v618 = vpack.c.b16 %v505, %v504
        %v619 = vpack.c.b16 %v507, %v506
        %v620 = vpack.c.b16 %v509, %v508
        %v621 = vpack.c.b16 %v511, %v510
        %v622 = vpack.c.b16 %v513, %v512
        %v623 = vpack.c.b16 %v515, %v514
        %v624 = vpack.c.b16 %v517, %v516
        %v625 = vpack.c.b16 %v519, %v518
        %v626 = vpack.c.b16 %v521, %v520
        %v627 = vpack.c.b16 %v523, %v522
        %v628 = vpack.c.b16 %v525, %v524
        %v629 = vpack.c.b16 %v527, %v526
        %v630 = vpack.c.b16 %v529, %v528
        %v631 = vpack.c.b16 %v531, %v530
        %v632 = vpack.c.b16 %v533, %v532
        %v633 = vpack.c.b16 %v535, %v534
        %v634 = vpack.c.b16 %v537, %v536
        %v635 = vpack.c.b16 %v539, %v538
        %v636 = vpack.c.b16 %v541, %v540
        %v637 = vpack.c.b16 %v543, %v542
        %v638 = vpack.c.b16 %v545, %v544
        %v639 = vpack.c.b16 %v547, %v546
        %v640 = vpack.c.b16 %v549, %v548
        %v641 = vpack.c.b16 %v551, %v550
        %v642 = vpack.c.b16 %v553, %v552
        %v643 = vpack.c.b16 %v555, %v554
        %v644 = vpack.c.b16 %v557, %v556
        %v645 = vpack.c.b16 %v559, %v558
        %v646 = vpack.c.b16 %v561, %v560
        %v647 = vpack.c.b16 %v563, %v562
        %v648 = vpack.c.b16 %v565, %v564
        %v649 = vpack.c.b16 %v567, %v566
        %v650 = vpack.c.b16 %v569, %v568
        %v651 = vpack.c.b16 %v571, %v570
        %v652 = vpack.c.b16 %v573, %v572
        %v653 = vpack.c.b16 %v575, %v574
        %v654 = vpack.c.b16 %v577, %v576
        %v655 = vpack.c.b16 %v579, %v578
        %v656 = vpack.c.b16 %v581, %v580
        %v657 = vpack.c.b16 %v583, %v582
        %v658 = vpack.c.b16 %v585, %v584
        %v659 = vpack.c.b16 %v587, %v586
        %v660 = vpack.c.b16 %v589, %v588
        %v661 = vpack.c.b16 %v591, %v590
        %v662 = vpack.c.b16 %v593, %v592
        %v663 = vpack.c.b16 %v595, %v594
        %v664 = vpack.c.b16 %v597, %v596
        %v665 = vpack.c.b16 %v599, %v598
        %v666 = vpack.c.b16 %v601, %v600
        %v667 = vpack.c.b16 %v603, %v602
        %v672 = vunpack.c.l.b16 %v344
        %v673 = vunpack.c.l.b16 %v345
        %v674 = vunpack.c.l.b16 %v346
        %v675 = vunpack.c.l.b16 %v347
        %v676 = vpack.c.b16 %v673, %v672
        %v677 = vpack.c.b16 %v675, %v674
        %vm680 = vcmask 261120
        %v682 = vsel %vm680, %v604, 0
        %v685 = vsel %vm680, %v605, 0
        %v688 = vsel %vm680, %v606, 0
        %v691 = vsel %vm680, %v607, 0
        %v694 = vsel %vm680, %v608, 0
        %v697 = vsel %vm680, %v609, 0
        %v700 = vsel %vm680, %v610, 0
        %v703 = vsel %vm680, %v611, 0
        %v706 = vsel %vm680, %v612, 0
        %v709 = vsel %vm680, %v613, 0
        %v712 = vsel %vm680, %v614, 0
        %v715 = vsel %vm680, %v615, 0
        %v718 = vsel %vm680, %v616, 0
        %v721 = vsel %vm680, %v617, 0
        %v724 = vsel %vm680, %v618, 0
        %v727 = vsel %vm680, %v619, 0
        %v730 = vsel %vm680, %v620, 0
        %v733 = vsel %vm680, %v621, 0
        %v736 = vsel %vm680, %v622, 0
        %v739 = vsel %vm680, %v623, 0
        %v742 = vsel %vm680, %v624, 0
        %v745 = vsel %vm680, %v625, 0
        %v748 = vsel %vm680, %v626, 0
        %v751 = vsel %vm680, %v627, 0
        %v754 = vsel %vm680, %v628, 0
        %v757 = vsel %vm680, %v629, 0
        %v760 = vsel %vm680, %v630, 0
        %v763 = vsel %vm680, %v631, 0
        %v766 = vsel %vm680, %v632, 0
        %v769 = vsel %vm680, %v633, 0
        %v772 = vsel %vm680, %v634, 0
        %v775 = vsel %vm680, %v635, 0
        %v778 = vsel %vm680, %v636, 0
        %v781 = vsel %vm680, %v637, 0
        %v784 = vsel %vm680, %v638, 0
        %v787 = vsel %vm680, %v639, 0
        %v790 = vsel %vm680, %v640, 0
        %v793 = vsel %vm680, %v641, 0
        %v796 = vsel %vm680, %v642, 0
        %v799 = vsel %vm680, %v643, 0
        %v802 = vsel %vm680, %v644, 0
        %v805 = vsel %vm680, %v645, 0
        %v808 = vsel %vm680, %v646, 0
        %v811 = vsel %vm680, %v647, 0
        %v814 = vsel %vm680, %v648, 0
        %v817 = vsel %vm680, %v649, 0
        %v820 = vsel %vm680, %v650, 0
        %v823 = vsel %vm680, %v651, 0
        %v826 = vsel %vm680, %v652, 0
        %v829 = vsel %vm680, %v653, 0
        %v832 = vsel %vm680, %v654, 0
        %v835 = vsel %vm680, %v655, 0
        %v838 = vsel %vm680, %v656, 0
        %v841 = vsel %vm680, %v657, 0
        %v844 = vsel %vm680, %v658, 0
        %v847 = vsel %vm680, %v659, 0
        %v850 = vsel %vm680, %v660, 0
        %v853 = vsel %vm680, %v661, 0
        %v856 = vsel %vm680, %v662, 0
        %v859 = vsel %vm680, %v663, 0
        %v862 = vsel %vm680, %v664, 0
        %v865 = vsel %vm680, %v665, 0
        %v868 = vsel %vm680, %v666, 0
        %v871 = vsel %vm680, %v667, 0
        %873 = vmatpush.bf16.msra.mxu0 0
        %874 = vmatpush.bf16.msra.mxu0 0
        %875 = vmatpush.bf16.msra.mxu0 0
        %876 = vmatpush.bf16.msra.mxu0 0
        %877 = vmatpush.bf16.msra.mxu0 0
        %878 = vmatpush.bf16.msra.mxu0 0
        %879 = vmatpush.bf16.msra.mxu0 %v677
        %880 = vmatpush.bf16.msra.mxu0 %v676
        %881 = vmatmul.bf16.gmra.mxu0 %v682
        %v882 = vpop.f32.mrf.mxu0
        %v883 = vadd.f32 0.0, %v882
        %v884 = vpop.f32.mrf.mxu0
        %v885 = vadd.f32 0.0, %v884
        %886 = vmatmul.bf16.gmra.mxu0 %v685
        %v887 = vpop.f32.mrf.mxu0
        %v888 = vadd.f32 0.0, %v887
        %v889 = vpop.f32.mrf.mxu0
        %v890 = vadd.f32 0.0, %v889
        %891 = vmatmul.bf16.gmra.mxu0 %v688
        %v892 = vpop.f32.mrf.mxu0
        %v893 = vadd.f32 0.0, %v892
        %v894 = vpop.f32.mrf.mxu0
        %v895 = vadd.f32 0.0, %v894
        %896 = vmatmul.bf16.gmra.mxu0 %v691
        %v897 = vpop.f32.mrf.mxu0
        %v898 = vadd.f32 0.0, %v897
        %v899 = vpop.f32.mrf.mxu0
        %v900 = vadd.f32 0.0, %v899
        %901 = vmatmul.bf16.gmra.mxu0 %v694
        %v902 = vpop.f32.mrf.mxu0
        %v903 = vadd.f32 0.0, %v902
        %v904 = vpop.f32.mrf.mxu0
        %v905 = vadd.f32 0.0, %v904
        %906 = vmatmul.bf16.gmra.mxu0 %v697
        %v907 = vpop.f32.mrf.mxu0
        %v908 = vadd.f32 0.0, %v907
        %v909 = vpop.f32.mrf.mxu0
        %v910 = vadd.f32 0.0, %v909
        %911 = vmatmul.bf16.gmra.mxu0 %v700
        %v912 = vpop.f32.mrf.mxu0
        %v913 = vadd.f32 0.0, %v912
        %v914 = vpop.f32.mrf.mxu0
        %v915 = vadd.f32 0.0, %v914
        %916 = vmatmul.bf16.gmra.mxu0 %v703
        %v917 = vpop.f32.mrf.mxu0
        %v918 = vadd.f32 0.0, %v917
        %v919 = vpop.f32.mrf.mxu0
        %v920 = vadd.f32 0.0, %v919
        %921 = vmatmul.bf16.gmra.mxu0 %v706
        %v922 = vpop.f32.mrf.mxu0
        %v923 = vadd.f32 0.0, %v922
        %v924 = vpop.f32.mrf.mxu0
        %v925 = vadd.f32 0.0, %v924
        %926 = vmatmul.bf16.gmra.mxu0 %v709
        %v927 = vpop.f32.mrf.mxu0
        %v928 = vadd.f32 0.0, %v927
        %v929 = vpop.f32.mrf.mxu0
        %v930 = vadd.f32 0.0, %v929
        %931 = vmatmul.bf16.gmra.mxu0 %v712
        %v932 = vpop.f32.mrf.mxu0
        %v933 = vadd.f32 0.0, %v932
        %v934 = vpop.f32.mrf.mxu0
        %v935 = vadd.f32 0.0, %v934
        %936 = vmatmul.bf16.gmra.mxu0 %v715
        %v937 = vpop.f32.mrf.mxu0
        %v938 = vadd.f32 0.0, %v937
        %v939 = vpop.f32.mrf.mxu0
        %v940 = vadd.f32 0.0, %v939
        %941 = vmatmul.bf16.gmra.mxu0 %v718
        %v942 = vpop.f32.mrf.mxu0
        %v943 = vadd.f32 0.0, %v942
        %v944 = vpop.f32.mrf.mxu0
        %v945 = vadd.f32 0.0, %v944
        %946 = vmatmul.bf16.gmra.mxu0 %v721
        %v947 = vpop.f32.mrf.mxu0
        %v948 = vadd.f32 0.0, %v947
        %v949 = vpop.f32.mrf.mxu0
        %v950 = vadd.f32 0.0, %v949
        %951 = vmatmul.bf16.gmra.mxu0 %v724
        %v952 = vpop.f32.mrf.mxu0
        %v953 = vadd.f32 0.0, %v952
        %v954 = vpop.f32.mrf.mxu0
        %v955 = vadd.f32 0.0, %v954
        %956 = vmatmul.bf16.gmra.mxu0 %v727
        %v957 = vpop.f32.mrf.mxu0
        %v958 = vadd.f32 0.0, %v957
        %v959 = vpop.f32.mrf.mxu0
        %v960 = vadd.f32 0.0, %v959
        %961 = vmatmul.bf16.gmra.mxu0 %v730
        %v962 = vpop.f32.mrf.mxu0
        %v963 = vadd.f32 0.0, %v962
        %v964 = vpop.f32.mrf.mxu0
        %v965 = vadd.f32 0.0, %v964
        %966 = vmatmul.bf16.gmra.mxu0 %v733
        %v967 = vpop.f32.mrf.mxu0
        %v968 = vadd.f32 0.0, %v967
        %v969 = vpop.f32.mrf.mxu0
        %v970 = vadd.f32 0.0, %v969
        %971 = vmatmul.bf16.gmra.mxu0 %v736
        %v972 = vpop.f32.mrf.mxu0
        %v973 = vadd.f32 0.0, %v972
        %v974 = vpop.f32.mrf.mxu0
        %v975 = vadd.f32 0.0, %v974
        %976 = vmatmul.bf16.gmra.mxu0 %v739
        %v977 = vpop.f32.mrf.mxu0
        %v978 = vadd.f32 0.0, %v977
        %v979 = vpop.f32.mrf.mxu0
        %v980 = vadd.f32 0.0, %v979
        %981 = vmatmul.bf16.gmra.mxu0 %v742
        %v982 = vpop.f32.mrf.mxu0
        %v983 = vadd.f32 0.0, %v982
        %v984 = vpop.f32.mrf.mxu0
        %v985 = vadd.f32 0.0, %v984
        %986 = vmatmul.bf16.gmra.mxu0 %v745
        %v987 = vpop.f32.mrf.mxu0
        %v988 = vadd.f32 0.0, %v987
        %v989 = vpop.f32.mrf.mxu0
        %v990 = vadd.f32 0.0, %v989
        %991 = vmatmul.bf16.gmra.mxu0 %v748
        %v992 = vpop.f32.mrf.mxu0
        %v993 = vadd.f32 0.0, %v992
        %v994 = vpop.f32.mrf.mxu0
        %v995 = vadd.f32 0.0, %v994
        %996 = vmatmul.bf16.gmra.mxu0 %v751
        %v997 = vpop.f32.mrf.mxu0
        %v998 = vadd.f32 0.0, %v997
        %v999 = vpop.f32.mrf.mxu0
        %v1000 = vadd.f32 0.0, %v999
        %1001 = vmatmul.bf16.gmra.mxu0 %v754
        %v1002 = vpop.f32.mrf.mxu0
        %v1003 = vadd.f32 0.0, %v1002
        %v1004 = vpop.f32.mrf.mxu0
        %v1005 = vadd.f32 0.0, %v1004
        %1006 = vmatmul.bf16.gmra.mxu0 %v757
        %v1007 = vpop.f32.mrf.mxu0
        %v1008 = vadd.f32 0.0, %v1007
        %v1009 = vpop.f32.mrf.mxu0
        %v1010 = vadd.f32 0.0, %v1009
        %1011 = vmatmul.bf16.gmra.mxu0 %v760
        %v1012 = vpop.f32.mrf.mxu0
        %v1013 = vadd.f32 0.0, %v1012
        %v1014 = vpop.f32.mrf.mxu0
        %v1015 = vadd.f32 0.0, %v1014
        %1016 = vmatmul.bf16.gmra.mxu0 %v763
        %v1017 = vpop.f32.mrf.mxu0
        %v1018 = vadd.f32 0.0, %v1017
        %v1019 = vpop.f32.mrf.mxu0
        %v1020 = vadd.f32 0.0, %v1019
        %1021 = vmatmul.bf16.gmra.mxu0 %v766
        %v1022 = vpop.f32.mrf.mxu0
        %v1023 = vadd.f32 0.0, %v1022
        %v1024 = vpop.f32.mrf.mxu0
        %v1025 = vadd.f32 0.0, %v1024
        %1026 = vmatmul.bf16.gmra.mxu0 %v769
        %v1027 = vpop.f32.mrf.mxu0
        %v1028 = vadd.f32 0.0, %v1027
        %v1029 = vpop.f32.mrf.mxu0
        %v1030 = vadd.f32 0.0, %v1029
        %1031 = vmatmul.bf16.gmra.mxu0 %v772
        %v1032 = vpop.f32.mrf.mxu0
        %v1033 = vadd.f32 0.0, %v1032
        %v1034 = vpop.f32.mrf.mxu0
        %v1035 = vadd.f32 0.0, %v1034
        %1036 = vmatmul.bf16.gmra.mxu0 %v775
        %v1037 = vpop.f32.mrf.mxu0
        %v1038 = vadd.f32 0.0, %v1037
        %v1039 = vpop.f32.mrf.mxu0
        %v1040 = vadd.f32 0.0, %v1039
        %1041 = vmatmul.bf16.gmra.mxu0 %v778
        %v1042 = vpop.f32.mrf.mxu0
        %v1043 = vadd.f32 0.0, %v1042
        %v1044 = vpop.f32.mrf.mxu0
        %v1045 = vadd.f32 0.0, %v1044
        %1046 = vmatmul.bf16.gmra.mxu0 %v781
        %v1047 = vpop.f32.mrf.mxu0
        %v1048 = vadd.f32 0.0, %v1047
        %v1049 = vpop.f32.mrf.mxu0
        %v1050 = vadd.f32 0.0, %v1049
        %1051 = vmatmul.bf16.gmra.mxu0 %v784
        %v1052 = vpop.f32.mrf.mxu0
        %v1053 = vadd.f32 0.0, %v1052
        %v1054 = vpop.f32.mrf.mxu0
        %v1055 = vadd.f32 0.0, %v1054
        %1056 = vmatmul.bf16.gmra.mxu0 %v787
        %v1057 = vpop.f32.mrf.mxu0
        %v1058 = vadd.f32 0.0, %v1057
        %v1059 = vpop.f32.mrf.mxu0
        %v1060 = vadd.f32 0.0, %v1059
        %1061 = vmatmul.bf16.gmra.mxu0 %v790
        %v1062 = vpop.f32.mrf.mxu0
        %v1063 = vadd.f32 0.0, %v1062
        %v1064 = vpop.f32.mrf.mxu0
        %v1065 = vadd.f32 0.0, %v1064
        %1066 = vmatmul.bf16.gmra.mxu0 %v793
        %v1067 = vpop.f32.mrf.mxu0
        %v1068 = vadd.f32 0.0, %v1067
        %v1069 = vpop.f32.mrf.mxu0
        %v1070 = vadd.f32 0.0, %v1069
        %1071 = vmatmul.bf16.gmra.mxu0 %v796
        %v1072 = vpop.f32.mrf.mxu0
        %v1073 = vadd.f32 0.0, %v1072
        %v1074 = vpop.f32.mrf.mxu0
        %v1075 = vadd.f32 0.0, %v1074
        %1076 = vmatmul.bf16.gmra.mxu0 %v799
        %v1077 = vpop.f32.mrf.mxu0
        %v1078 = vadd.f32 0.0, %v1077
        %v1079 = vpop.f32.mrf.mxu0
        %v1080 = vadd.f32 0.0, %v1079
        %1081 = vmatmul.bf16.gmra.mxu0 %v802
        %v1082 = vpop.f32.mrf.mxu0
        %v1083 = vadd.f32 0.0, %v1082
        %v1084 = vpop.f32.mrf.mxu0
        %v1085 = vadd.f32 0.0, %v1084
        %1086 = vmatmul.bf16.gmra.mxu0 %v805
        %v1087 = vpop.f32.mrf.mxu0
        %v1088 = vadd.f32 0.0, %v1087
        %v1089 = vpop.f32.mrf.mxu0
        %v1090 = vadd.f32 0.0, %v1089
        %1091 = vmatmul.bf16.gmra.mxu0 %v808
        %v1092 = vpop.f32.mrf.mxu0
        %v1093 = vadd.f32 0.0, %v1092
        %v1094 = vpop.f32.mrf.mxu0
        %v1095 = vadd.f32 0.0, %v1094
        %1096 = vmatmul.bf16.gmra.mxu0 %v811
        %v1097 = vpop.f32.mrf.mxu0
        %v1098 = vadd.f32 0.0, %v1097
        %v1099 = vpop.f32.mrf.mxu0
        %v1100 = vadd.f32 0.0, %v1099
        %1101 = vmatmul.bf16.gmra.mxu0 %v814
        %v1102 = vpop.f32.mrf.mxu0
        %v1103 = vadd.f32 0.0, %v1102
        %v1104 = vpop.f32.mrf.mxu0
        %v1105 = vadd.f32 0.0, %v1104
        %1106 = vmatmul.bf16.gmra.mxu0 %v817
        %v1107 = vpop.f32.mrf.mxu0
        %v1108 = vadd.f32 0.0, %v1107
        %v1109 = vpop.f32.mrf.mxu0
        %v1110 = vadd.f32 0.0, %v1109
        %1111 = vmatmul.bf16.gmra.mxu0 %v820
        %v1112 = vpop.f32.mrf.mxu0
        %v1113 = vadd.f32 0.0, %v1112
        %v1114 = vpop.f32.mrf.mxu0
        %v1115 = vadd.f32 0.0, %v1114
        %1116 = vmatmul.bf16.gmra.mxu0 %v823
        %v1117 = vpop.f32.mrf.mxu0
        %v1118 = vadd.f32 0.0, %v1117
        %v1119 = vpop.f32.mrf.mxu0
        %v1120 = vadd.f32 0.0, %v1119
        %1121 = vmatmul.bf16.gmra.mxu0 %v826
        %v1122 = vpop.f32.mrf.mxu0
        %v1123 = vadd.f32 0.0, %v1122
        %v1124 = vpop.f32.mrf.mxu0
        %v1125 = vadd.f32 0.0, %v1124
        %1126 = vmatmul.bf16.gmra.mxu0 %v829
        %v1127 = vpop.f32.mrf.mxu0
        %v1128 = vadd.f32 0.0, %v1127
        %v1129 = vpop.f32.mrf.mxu0
        %v1130 = vadd.f32 0.0, %v1129
        %1131 = vmatmul.bf16.gmra.mxu0 %v832
        %v1132 = vpop.f32.mrf.mxu0
        %v1133 = vadd.f32 0.0, %v1132
        %v1134 = vpop.f32.mrf.mxu0
        %v1135 = vadd.f32 0.0, %v1134
        %1136 = vmatmul.bf16.gmra.mxu0 %v835
        %v1137 = vpop.f32.mrf.mxu0
        %v1138 = vadd.f32 0.0, %v1137
        %v1139 = vpop.f32.mrf.mxu0
        %v1140 = vadd.f32 0.0, %v1139
        %1141 = vmatmul.bf16.gmra.mxu0 %v838
        %v1142 = vpop.f32.mrf.mxu0
        %v1143 = vadd.f32 0.0, %v1142
        %v1144 = vpop.f32.mrf.mxu0
        %v1145 = vadd.f32 0.0, %v1144
        %1146 = vmatmul.bf16.gmra.mxu0 %v841
        %v1147 = vpop.f32.mrf.mxu0
        %v1148 = vadd.f32 0.0, %v1147
        %v1149 = vpop.f32.mrf.mxu0
        %v1150 = vadd.f32 0.0, %v1149
        %1151 = vmatmul.bf16.gmra.mxu0 %v844
        %v1152 = vpop.f32.mrf.mxu0
        %v1153 = vadd.f32 0.0, %v1152
        %v1154 = vpop.f32.mrf.mxu0
        %v1155 = vadd.f32 0.0, %v1154
        %1156 = vmatmul.bf16.gmra.mxu0 %v847
        %v1157 = vpop.f32.mrf.mxu0
        %v1158 = vadd.f32 0.0, %v1157
        %v1159 = vpop.f32.mrf.mxu0
        %v1160 = vadd.f32 0.0, %v1159
        %1161 = vmatmul.bf16.gmra.mxu0 %v850
        %v1162 = vpop.f32.mrf.mxu0
        %v1163 = vadd.f32 0.0, %v1162
        %v1164 = vpop.f32.mrf.mxu0
        %v1165 = vadd.f32 0.0, %v1164
        %1166 = vmatmul.bf16.gmra.mxu0 %v853
        %v1167 = vpop.f32.mrf.mxu0
        %v1168 = vadd.f32 0.0, %v1167
        %v1169 = vpop.f32.mrf.mxu0
        %v1170 = vadd.f32 0.0, %v1169
        %1171 = vmatmul.bf16.gmra.mxu0 %v856
        %v1172 = vpop.f32.mrf.mxu0
        %v1173 = vadd.f32 0.0, %v1172
        %v1174 = vpop.f32.mrf.mxu0
        %v1175 = vadd.f32 0.0, %v1174
        %1176 = vmatmul.bf16.gmra.mxu0 %v859
        %v1177 = vpop.f32.mrf.mxu0
        %v1178 = vadd.f32 0.0, %v1177
        %v1179 = vpop.f32.mrf.mxu0
        %v1180 = vadd.f32 0.0, %v1179
        %1181 = vmatmul.bf16.gmra.mxu0 %v862
        %v1182 = vpop.f32.mrf.mxu0
        %v1183 = vadd.f32 0.0, %v1182
        %v1184 = vpop.f32.mrf.mxu0
        %v1185 = vadd.f32 0.0, %v1184
        %1186 = vmatmul.bf16.gmra.mxu0 %v865
        %v1187 = vpop.f32.mrf.mxu0
        %v1188 = vadd.f32 0.0, %v1187
        %v1189 = vpop.f32.mrf.mxu0
        %v1190 = vadd.f32 0.0, %v1189
        %1191 = vmatmul.bf16.gmra.mxu0 %v868
        %v1192 = vpop.f32.mrf.mxu0
        %v1193 = vadd.f32 0.0, %v1192
        %v1194 = vpop.f32.mrf.mxu0
        %v1195 = vadd.f32 0.0, %v1194
        %1196 = vmatmul.bf16.gmra.mxu0 %v871
        %v1197 = vpop.f32.mrf.mxu0
        %v1198 = vadd.f32 0.0, %v1197
        %v1199 = vpop.f32.mrf.mxu0
        %v1200 = vadd.f32 0.0, %v1199
        %1201 = vdwg.mxu0
        %v1202 = vpack.c.bf16 %v883, %v883
        %v1203 = vpack.c.bf16 %v885, %v885
        %v1204 = vpack.c.bf16 %v888, %v888
        %v1205 = vpack.c.bf16 %v890, %v890
        %v1206 = vpack.c.bf16 %v893, %v893
        %v1207 = vpack.c.bf16 %v895, %v895
        %v1208 = vpack.c.bf16 %v898, %v898
        %v1209 = vpack.c.bf16 %v900, %v900
        %v1210 = vpack.c.bf16 %v903, %v903
        %v1211 = vpack.c.bf16 %v905, %v905
        %v1212 = vpack.c.bf16 %v908, %v908
        %v1213 = vpack.c.bf16 %v910, %v910
        %v1214 = vpack.c.bf16 %v913, %v913
        %v1215 = vpack.c.bf16 %v915, %v915
        %v1216 = vpack.c.bf16 %v918, %v918
        %v1217 = vpack.c.bf16 %v920, %v920
        %v1218 = vpack.c.bf16 %v923, %v923
        %v1219 = vpack.c.bf16 %v925, %v925
        %v1220 = vpack.c.bf16 %v928, %v928
        %v1221 = vpack.c.bf16 %v930, %v930
        %v1222 = vpack.c.bf16 %v933, %v933
        %v1223 = vpack.c.bf16 %v935, %v935
        %v1224 = vpack.c.bf16 %v938, %v938
        %v1225 = vpack.c.bf16 %v940, %v940
        %v1226 = vpack.c.bf16 %v943, %v943
        %v1227 = vpack.c.bf16 %v945, %v945
        %v1228 = vpack.c.bf16 %v948, %v948
        %v1229 = vpack.c.bf16 %v950, %v950
        %v1230 = vpack.c.bf16 %v953, %v953
        %v1231 = vpack.c.bf16 %v955, %v955
        %v1232 = vpack.c.bf16 %v958, %v958
        %v1233 = vpack.c.bf16 %v960, %v960
        %v1234 = vpack.c.bf16 %v963, %v963
        %v1235 = vpack.c.bf16 %v965, %v965
        %v1236 = vpack.c.bf16 %v968, %v968
        %v1237 = vpack.c.bf16 %v970, %v970
        %v1238 = vpack.c.bf16 %v973, %v973
        %v1239 = vpack.c.bf16 %v975, %v975
        %v1240 = vpack.c.bf16 %v978, %v978
        %v1241 = vpack.c.bf16 %v980, %v980
        %v1242 = vpack.c.bf16 %v983, %v983
        %v1243 = vpack.c.bf16 %v985, %v985
        %v1244 = vpack.c.bf16 %v988, %v988
        %v1245 = vpack.c.bf16 %v990, %v990
        %v1246 = vpack.c.bf16 %v993, %v993
        %v1247 = vpack.c.bf16 %v995, %v995
        %v1248 = vpack.c.bf16 %v998, %v998
        %v1249 = vpack.c.bf16 %v1000, %v1000
        %v1250 = vpack.c.bf16 %v1003, %v1003
        %v1251 = vpack.c.bf16 %v1005, %v1005
        %v1252 = vpack.c.bf16 %v1008, %v1008
        %v1253 = vpack.c.bf16 %v1010, %v1010
        %v1254 = vpack.c.bf16 %v1013, %v1013
        %v1255 = vpack.c.bf16 %v1015, %v1015
        %v1256 = vpack.c.bf16 %v1018, %v1018
        %v1257 = vpack.c.bf16 %v1020, %v1020
        %v1258 = vpack.c.bf16 %v1023, %v1023
        %v1259 = vpack.c.bf16 %v1025, %v1025
        %v1260 = vpack.c.bf16 %v1028, %v1028
        %v1261 = vpack.c.bf16 %v1030, %v1030
        %v1262 = vpack.c.bf16 %v1033, %v1033
        %v1263 = vpack.c.bf16 %v1035, %v1035
        %v1264 = vpack.c.bf16 %v1038, %v1038
        %v1265 = vpack.c.bf16 %v1040, %v1040
        %v1266 = vpack.c.bf16 %v1043, %v1043
        %v1267 = vpack.c.bf16 %v1045, %v1045
        %v1268 = vpack.c.bf16 %v1048, %v1048
        %v1269 = vpack.c.bf16 %v1050, %v1050
        %v1270 = vpack.c.bf16 %v1053, %v1053
        %v1271 = vpack.c.bf16 %v1055, %v1055
        %v1272 = vpack.c.bf16 %v1058, %v1058
        %v1273 = vpack.c.bf16 %v1060, %v1060
        %v1274 = vpack.c.bf16 %v1063, %v1063
        %v1275 = vpack.c.bf16 %v1065, %v1065
        %v1276 = vpack.c.bf16 %v1068, %v1068
        %v1277 = vpack.c.bf16 %v1070, %v1070
        %v1278 = vpack.c.bf16 %v1073, %v1073
        %v1279 = vpack.c.bf16 %v1075, %v1075
        %v1280 = vpack.c.bf16 %v1078, %v1078
        %v1281 = vpack.c.bf16 %v1080, %v1080
        %v1282 = vpack.c.bf16 %v1083, %v1083
        %v1283 = vpack.c.bf16 %v1085, %v1085
        %v1284 = vpack.c.bf16 %v1088, %v1088
        %v1285 = vpack.c.bf16 %v1090, %v1090
        %v1286 = vpack.c.bf16 %v1093, %v1093
        %v1287 = vpack.c.bf16 %v1095, %v1095
        %v1288 = vpack.c.bf16 %v1098, %v1098
        %v1289 = vpack.c.bf16 %v1100, %v1100
        %v1290 = vpack.c.bf16 %v1103, %v1103
        %v1291 = vpack.c.bf16 %v1105, %v1105
        %v1292 = vpack.c.bf16 %v1108, %v1108
        %v1293 = vpack.c.bf16 %v1110, %v1110
        %v1294 = vpack.c.bf16 %v1113, %v1113
        %v1295 = vpack.c.bf16 %v1115, %v1115
        %v1296 = vpack.c.bf16 %v1118, %v1118
        %v1297 = vpack.c.bf16 %v1120, %v1120
        %v1298 = vpack.c.bf16 %v1123, %v1123
        %v1299 = vpack.c.bf16 %v1125, %v1125
        %v1300 = vpack.c.bf16 %v1128, %v1128
        %v1301 = vpack.c.bf16 %v1130, %v1130
        %v1302 = vpack.c.bf16 %v1133, %v1133
        %v1303 = vpack.c.bf16 %v1135, %v1135
        %v1304 = vpack.c.bf16 %v1138, %v1138
        %v1305 = vpack.c.bf16 %v1140, %v1140
        %v1306 = vpack.c.bf16 %v1143, %v1143
        %v1307 = vpack.c.bf16 %v1145, %v1145
        %v1308 = vpack.c.bf16 %v1148, %v1148
        %v1309 = vpack.c.bf16 %v1150, %v1150
        %v1310 = vpack.c.bf16 %v1153, %v1153
        %v1311 = vpack.c.bf16 %v1155, %v1155
        %v1312 = vpack.c.bf16 %v1158, %v1158
        %v1313 = vpack.c.bf16 %v1160, %v1160
        %v1314 = vpack.c.bf16 %v1163, %v1163
        %v1315 = vpack.c.bf16 %v1165, %v1165
        %v1316 = vpack.c.bf16 %v1168, %v1168
        %v1317 = vpack.c.bf16 %v1170, %v1170
        %v1318 = vpack.c.bf16 %v1173, %v1173
        %v1319 = vpack.c.bf16 %v1175, %v1175
        %v1320 = vpack.c.bf16 %v1178, %v1178
        %v1321 = vpack.c.bf16 %v1180, %v1180
        %v1322 = vpack.c.bf16 %v1183, %v1183
        %v1323 = vpack.c.bf16 %v1185, %v1185
        %v1324 = vpack.c.bf16 %v1188, %v1188
        %v1325 = vpack.c.bf16 %v1190, %v1190
        %v1326 = vpack.c.bf16 %v1193, %v1193
        %v1327 = vpack.c.bf16 %v1195, %v1195
        %v1328 = vpack.c.bf16 %v1198, %v1198
        %v1329 = vpack.c.bf16 %v1200, %v1200
        %1330 = vst [vmem:[%s195] sm:$0xf] %v1202
        %1331 = vst [vmem:[%s195 + $0x4] sm:$0xf] %v1203
        %1332 = vst [vmem:[%s195 + $0x8] sm:$0xf] %v1204
        %1333 = vst [vmem:[%s195 + $0xc] sm:$0xf] %v1205
        %1334 = vst [vmem:[%s195 + $0x10] sm:$0xf] %v1206
        %1335 = vst [vmem:[%s195 + $0x14] sm:$0xf] %v1207
        %1336 = vst [vmem:[%s195 + $0x18] sm:$0xf] %v1208
        %1337 = vst [vmem:[%s195 + $0x1c] sm:$0xf] %v1209
        %1338 = vst [vmem:[%s195 + $0x20] sm:$0xf] %v1210
        %1339 = vst [vmem:[%s195 + $0x24] sm:$0xf] %v1211
        %1340 = vst [vmem:[%s195 + $0x28] sm:$0xf] %v1212
        %1341 = vst [vmem:[%s195 + $0x2c] sm:$0xf] %v1213
        %1342 = vst [vmem:[%s195 + $0x30] sm:$0xf] %v1214
        %1343 = vst [vmem:[%s195 + $0x34] sm:$0xf] %v1215
        %1344 = vst [vmem:[%s195 + $0x38] sm:$0xf] %v1216
        %1345 = vst [vmem:[%s195 + $0x3c] sm:$0xf] %v1217
        %1346 = vst [vmem:[%s195 + $0x40] sm:$0xf] %v1218
        %1347 = vst [vmem:[%s195 + $0x44] sm:$0xf] %v1219
        %1348 = vst [vmem:[%s195 + $0x48] sm:$0xf] %v1220
        %1349 = vst [vmem:[%s195 + $0x4c] sm:$0xf] %v1221
        %1350 = vst [vmem:[%s195 + $0x50] sm:$0xf] %v1222
        %1351 = vst [vmem:[%s195 + $0x54] sm:$0xf] %v1223
        %1352 = vst [vmem:[%s195 + $0x58] sm:$0xf] %v1224
        %1353 = vst [vmem:[%s195 + $0x5c] sm:$0xf] %v1225
        %1354 = vst [vmem:[%s195 + $0x60] sm:$0xf] %v1226
        %1355 = vst [vmem:[%s195 + $0x64] sm:$0xf] %v1227
        %1356 = vst [vmem:[%s195 + $0x68] sm:$0xf] %v1228
        %1357 = vst [vmem:[%s195 + $0x6c] sm:$0xf] %v1229
        %1358 = vst [vmem:[%s195 + $0x70] sm:$0xf] %v1230
        %1359 = vst [vmem:[%s195 + $0x74] sm:$0xf] %v1231
        %1360 = vst [vmem:[%s195 + $0x78] sm:$0xf] %v1232
        %1361 = vst [vmem:[%s195 + $0x7c] sm:$0xf] %v1233
        %1362 = vst [vmem:[%s195 + $0x80] sm:$0xf] %v1234
        %1363 = vst [vmem:[%s195 + $0x84] sm:$0xf] %v1235
        %1364 = vst [vmem:[%s195 + $0x88] sm:$0xf] %v1236
        %1365 = vst [vmem:[%s195 + $0x8c] sm:$0xf] %v1237
        %1366 = vst [vmem:[%s195 + $0x90] sm:$0xf] %v1238
        %1367 = vst [vmem:[%s195 + $0x94] sm:$0xf] %v1239
        %1368 = vst [vmem:[%s195 + $0x98] sm:$0xf] %v1240
        %1369 = vst [vmem:[%s195 + $0x9c] sm:$0xf] %v1241
        %1370 = vst [vmem:[%s195 + $0xa0] sm:$0xf] %v1242
        %1371 = vst [vmem:[%s195 + $0xa4] sm:$0xf] %v1243
        %1372 = vst [vmem:[%s195 + $0xa8] sm:$0xf] %v1244
        %1373 = vst [vmem:[%s195 + $0xac] sm:$0xf] %v1245
        %1374 = vst [vmem:[%s195 + $0xb0] sm:$0xf] %v1246
        %1375 = vst [vmem:[%s195 + $0xb4] sm:$0xf] %v1247
        %1376 = vst [vmem:[%s195 + $0xb8] sm:$0xf] %v1248
        %1377 = vst [vmem:[%s195 + $0xbc] sm:$0xf] %v1249
        %1378 = vst [vmem:[%s195 + $0xc0] sm:$0xf] %v1250
        %1379 = vst [vmem:[%s195 + $0xc4] sm:$0xf] %v1251
        %1380 = vst [vmem:[%s195 + $0xc8] sm:$0xf] %v1252
        %1381 = vst [vmem:[%s195 + $0xcc] sm:$0xf] %v1253
        %1382 = vst [vmem:[%s195 + $0xd0] sm:$0xf] %v1254
        %1383 = vst [vmem:[%s195 + $0xd4] sm:$0xf] %v1255
        %1384 = vst [vmem:[%s195 + $0xd8] sm:$0xf] %v1256
        %1385 = vst [vmem:[%s195 + $0xdc] sm:$0xf] %v1257
        %1386 = vst [vmem:[%s195 + $0xe0] sm:$0xf] %v1258
        %1387 = vst [vmem:[%s195 + $0xe4] sm:$0xf] %v1259
        %1388 = vst [vmem:[%s195 + $0xe8] sm:$0xf] %v1260
        %1389 = vst [vmem:[%s195 + $0xec] sm:$0xf] %v1261
        %1390 = vst [vmem:[%s195 + $0xf0] sm:$0xf] %v1262
        %1391 = vst [vmem:[%s195 + $0xf4] sm:$0xf] %v1263
        %1392 = vst [vmem:[%s195 + $0xf8] sm:$0xf] %v1264
        %1393 = vst [vmem:[%s195 + $0xfc] sm:$0xf] %v1265
        %1394 = vst [vmem:[%s195 + $0x100] sm:$0xf] %v1266
        %1395 = vst [vmem:[%s195 + $0x104] sm:$0xf] %v1267
        %1396 = vst [vmem:[%s195 + $0x108] sm:$0xf] %v1268
        %1397 = vst [vmem:[%s195 + $0x10c] sm:$0xf] %v1269
        %1398 = vst [vmem:[%s195 + $0x110] sm:$0xf] %v1270
        %1399 = vst [vmem:[%s195 + $0x114] sm:$0xf] %v1271
        %1400 = vst [vmem:[%s195 + $0x118] sm:$0xf] %v1272
        %1401 = vst [vmem:[%s195 + $0x11c] sm:$0xf] %v1273
        %1402 = vst [vmem:[%s195 + $0x120] sm:$0xf] %v1274
        %1403 = vst [vmem:[%s195 + $0x124] sm:$0xf] %v1275
        %1404 = vst [vmem:[%s195 + $0x128] sm:$0xf] %v1276
        %1405 = vst [vmem:[%s195 + $0x12c] sm:$0xf] %v1277
        %1406 = vst [vmem:[%s195 + $0x130] sm:$0xf] %v1278
        %1407 = vst [vmem:[%s195 + $0x134] sm:$0xf] %v1279
        %1408 = vst [vmem:[%s195 + $0x138] sm:$0xf] %v1280
        %1409 = vst [vmem:[%s195 + $0x13c] sm:$0xf] %v1281
        %1410 = vst [vmem:[%s195 + $0x140] sm:$0xf] %v1282
        %1411 = vst [vmem:[%s195 + $0x144] sm:$0xf] %v1283
        %1412 = vst [vmem:[%s195 + $0x148] sm:$0xf] %v1284
        %1413 = vst [vmem:[%s195 + $0x14c] sm:$0xf] %v1285
        %1414 = vst [vmem:[%s195 + $0x150] sm:$0xf] %v1286
        %1415 = vst [vmem:[%s195 + $0x154] sm:$0xf] %v1287
        %1416 = vst [vmem:[%s195 + $0x158] sm:$0xf] %v1288
        %1417 = vst [vmem:[%s195 + $0x15c] sm:$0xf] %v1289
        %1418 = vst [vmem:[%s195 + $0x160] sm:$0xf] %v1290
        %1419 = vst [vmem:[%s195 + $0x164] sm:$0xf] %v1291
        %1420 = vst [vmem:[%s195 + $0x168] sm:$0xf] %v1292
        %1421 = vst [vmem:[%s195 + $0x16c] sm:$0xf] %v1293
        %1422 = vst [vmem:[%s195 + $0x170] sm:$0xf] %v1294
        %1423 = vst [vmem:[%s195 + $0x174] sm:$0xf] %v1295
        %1424 = vst [vmem:[%s195 + $0x178] sm:$0xf] %v1296
        %1425 = vst [vmem:[%s195 + $0x17c] sm:$0xf] %v1297
        %1426 = vst [vmem:[%s195 + $0x180] sm:$0xf] %v1298
        %1427 = vst [vmem:[%s195 + $0x184] sm:$0xf] %v1299
        %1428 = vst [vmem:[%s195 + $0x188] sm:$0xf] %v1300
        %1429 = vst [vmem:[%s195 + $0x18c] sm:$0xf] %v1301
        %1430 = vst [vmem:[%s195 + $0x190] sm:$0xf] %v1302
        %1431 = vst [vmem:[%s195 + $0x194] sm:$0xf] %v1303
        %1432 = vst [vmem:[%s195 + $0x198] sm:$0xf] %v1304
        %1433 = vst [vmem:[%s195 + $0x19c] sm:$0xf] %v1305
        %1434 = vst [vmem:[%s195 + $0x1a0] sm:$0xf] %v1306
        %1435 = vst [vmem:[%s195 + $0x1a4] sm:$0xf] %v1307
        %1436 = vst [vmem:[%s195 + $0x1a8] sm:$0xf] %v1308
        %1437 = vst [vmem:[%s195 + $0x1ac] sm:$0xf] %v1309
        %1438 = vst [vmem:[%s195 + $0x1b0] sm:$0xf] %v1310
        %1439 = vst [vmem:[%s195 + $0x1b4] sm:$0xf] %v1311
        %1440 = vst [vmem:[%s195 + $0x1b8] sm:$0xf] %v1312
        %1441 = vst [vmem:[%s195 + $0x1bc] sm:$0xf] %v1313
        %1442 = vst [vmem:[%s195 + $0x1c0] sm:$0xf] %v1314
        %1443 = vst [vmem:[%s195 + $0x1c4] sm:$0xf] %v1315
        %1444 = vst [vmem:[%s195 + $0x1c8] sm:$0xf] %v1316
        %1445 = vst [vmem:[%s195 + $0x1cc] sm:$0xf] %v1317
        %1446 = vst [vmem:[%s195 + $0x1d0] sm:$0xf] %v1318
        %1447 = vst [vmem:[%s195 + $0x1d4] sm:$0xf] %v1319
        %1448 = vst [vmem:[%s195 + $0x1d8] sm:$0xf] %v1320
        %1449 = vst [vmem:[%s195 + $0x1dc] sm:$0xf] %v1321
        %1450 = vst [vmem:[%s195 + $0x1e0] sm:$0xf] %v1322
        %1451 = vst [vmem:[%s195 + $0x1e4] sm:$0xf] %v1323
        %1452 = vst [vmem:[%s195 + $0x1e8] sm:$0xf] %v1324
        %1453 = vst [vmem:[%s195 + $0x1ec] sm:$0xf] %v1325
        %1454 = vst [vmem:[%s195 + $0x1f0] sm:$0xf] %v1326
        %1455 = vst [vmem:[%s195 + $0x1f4] sm:$0xf] %v1327
        %1456 = vst [vmem:[%s195 + $0x1f8] sm:$0xf] %v1328
        %1457 = vst [vmem:[%s195 + $0x1fc] sm:$0xf] %v1329
        %v1458 = vadd.f32 %v883, %v885
        %v1459 = vadd.f32 %v1458, %v888
        %v1460 = vadd.f32 %v1459, %v890
        %v1461 = vadd.f32 %v1460, %v893
        %v1462 = vadd.f32 %v1461, %v895
        %v1463 = vadd.f32 %v1462, %v898
        %v1464 = vadd.f32 %v1463, %v900
        %v1465 = vadd.f32 %v1464, %v903
        %v1466 = vadd.f32 %v1465, %v905
        %v1467 = vadd.f32 %v1466, %v908
        %v1468 = vadd.f32 %v1467, %v910
        %v1469 = vadd.f32 %v1468, %v913
        %v1470 = vadd.f32 %v1469, %v915
        %v1471 = vadd.f32 %v1470, %v918
        %v1472 = vadd.f32 %v1471, %v920
        %v1473 = vadd.f32 %v1472, %v923
        %v1474 = vadd.f32 %v1473, %v925
        %v1475 = vadd.f32 %v1474, %v928
        %v1476 = vadd.f32 %v1475, %v930
        %v1477 = vadd.f32 %v1476, %v933
        %v1478 = vadd.f32 %v1477, %v935
        %v1479 = vadd.f32 %v1478, %v938
        %v1480 = vadd.f32 %v1479, %v940
        %v1481 = vadd.f32 %v1480, %v943
        %v1482 = vadd.f32 %v1481, %v945
        %v1483 = vadd.f32 %v1482, %v948
        %v1484 = vadd.f32 %v1483, %v950
        %v1485 = vadd.f32 %v1484, %v953
        %v1486 = vadd.f32 %v1485, %v955
        %v1487 = vadd.f32 %v1486, %v958
        %v1488 = vadd.f32 %v1487, %v960
        %v1489 = vadd.f32 %v1488, %v963
        %v1490 = vadd.f32 %v1489, %v965
        %v1491 = vadd.f32 %v1490, %v968
        %v1492 = vadd.f32 %v1491, %v970
        %v1493 = vadd.f32 %v1492, %v973
        %v1494 = vadd.f32 %v1493, %v975
        %v1495 = vadd.f32 %v1494, %v978
        %v1496 = vadd.f32 %v1495, %v980
        %v1497 = vadd.f32 %v1496, %v983
        %v1498 = vadd.f32 %v1497, %v985
        %v1499 = vadd.f32 %v1498, %v988
        %v1500 = vadd.f32 %v1499, %v990
        %v1501 = vadd.f32 %v1500, %v993
        %v1502 = vadd.f32 %v1501, %v995
        %v1503 = vadd.f32 %v1502, %v998
        %v1504 = vadd.f32 %v1503, %v1000
        %v1505 = vadd.f32 %v1504, %v1003
        %v1506 = vadd.f32 %v1505, %v1005
        %v1507 = vadd.f32 %v1506, %v1008
        %v1508 = vadd.f32 %v1507, %v1010
        %v1509 = vadd.f32 %v1508, %v1013
        %v1510 = vadd.f32 %v1509, %v1015
        %v1511 = vadd.f32 %v1510, %v1018
        %v1512 = vadd.f32 %v1511, %v1020
        %v1513 = vadd.f32 %v1512, %v1023
        %v1514 = vadd.f32 %v1513, %v1025
        %v1515 = vadd.f32 %v1514, %v1028
        %v1516 = vadd.f32 %v1515, %v1030
        %v1517 = vadd.f32 %v1516, %v1033
        %v1518 = vadd.f32 %v1517, %v1035
        %v1519 = vadd.f32 %v1518, %v1038
        %v1520 = vadd.f32 %v1519, %v1040
        %v1521 = vadd.f32 %v1520, %v1043
        %v1522 = vadd.f32 %v1521, %v1045
        %v1523 = vadd.f32 %v1522, %v1048
        %v1524 = vadd.f32 %v1523, %v1050
        %v1525 = vadd.f32 %v1524, %v1053
        %v1526 = vadd.f32 %v1525, %v1055
        %v1527 = vadd.f32 %v1526, %v1058
        %v1528 = vadd.f32 %v1527, %v1060
        %v1529 = vadd.f32 %v1528, %v1063
        %v1530 = vadd.f32 %v1529, %v1065
        %v1531 = vadd.f32 %v1530, %v1068
        %v1532 = vadd.f32 %v1531, %v1070
        %v1533 = vadd.f32 %v1532, %v1073
        %v1534 = vadd.f32 %v1533, %v1075
        %v1535 = vadd.f32 %v1534, %v1078
        %v1536 = vadd.f32 %v1535, %v1080
        %v1537 = vadd.f32 %v1536, %v1083
        %v1538 = vadd.f32 %v1537, %v1085
        %v1539 = vadd.f32 %v1538, %v1088
        %v1540 = vadd.f32 %v1539, %v1090
        %v1541 = vadd.f32 %v1540, %v1093
        %v1542 = vadd.f32 %v1541, %v1095
        %v1543 = vadd.f32 %v1542, %v1098
        %v1544 = vadd.f32 %v1543, %v1100
        %v1545 = vadd.f32 %v1544, %v1103
        %v1546 = vadd.f32 %v1545, %v1105
        %v1547 = vadd.f32 %v1546, %v1108
        %v1548 = vadd.f32 %v1547, %v1110
        %v1549 = vadd.f32 %v1548, %v1113
        %v1550 = vadd.f32 %v1549, %v1115
        %v1551 = vadd.f32 %v1550, %v1118
        %v1552 = vadd.f32 %v1551, %v1120
        %v1553 = vadd.f32 %v1552, %v1123
        %v1554 = vadd.f32 %v1553, %v1125
        %v1555 = vadd.f32 %v1554, %v1128
        %v1556 = vadd.f32 %v1555, %v1130
        %v1557 = vadd.f32 %v1556, %v1133
        %v1558 = vadd.f32 %v1557, %v1135
        %v1559 = vadd.f32 %v1558, %v1138
        %v1560 = vadd.f32 %v1559, %v1140
        %v1561 = vadd.f32 %v1560, %v1143
        %v1562 = vadd.f32 %v1561, %v1145
        %v1563 = vadd.f32 %v1562, %v1148
        %v1564 = vadd.f32 %v1563, %v1150
        %v1565 = vadd.f32 %v1564, %v1153
        %v1566 = vadd.f32 %v1565, %v1155
        %v1567 = vadd.f32 %v1566, %v1158
        %v1568 = vadd.f32 %v1567, %v1160
        %v1569 = vadd.f32 %v1568, %v1163
        %v1570 = vadd.f32 %v1569, %v1165
        %v1571 = vadd.f32 %v1570, %v1168
        %v1572 = vadd.f32 %v1571, %v1170
        %v1573 = vadd.f32 %v1572, %v1173
        %v1574 = vadd.f32 %v1573, %v1175
        %v1575 = vadd.f32 %v1574, %v1178
        %v1576 = vadd.f32 %v1575, %v1180
        %v1577 = vadd.f32 %v1576, %v1183
        %v1578 = vadd.f32 %v1577, %v1185
        %v1579 = vadd.f32 %v1578, %v1188
        %v1580 = vadd.f32 %v1579, %v1190
        %v1581 = vadd.f32 %v1580, %v1193
        %v1582 = vadd.f32 %v1581, %v1195
        %v1583 = vadd.f32 %v1582, %v1198
        %v1584 = vadd.f32 %v1583, %v1200
        %v1585 = vrot.slane %v1584, 4
        %v1586 = vadd.f32 %v1584, %v1585
        %v1587 = vrot.slane %v1586, 2
        %v1588 = vadd.f32 %v1586, %v1587
        %v1589 = vrot.slane %v1588, 1
        %v1590 = vadd.f32 %v1588, %v1589
        %1591 = vst [vmem:[%s201] sm:$0x1] %v1590
        %v1592 = vmul.f32 %v883, %v883
        %v1593 = vmul.f32 %v885, %v885
        %v1594 = vmul.f32 %v888, %v888
        %v1595 = vmul.f32 %v890, %v890
        %v1596 = vmul.f32 %v893, %v893
        %v1597 = vmul.f32 %v895, %v895
        %v1598 = vmul.f32 %v898, %v898
        %v1599 = vmul.f32 %v900, %v900
        %v1600 = vmul.f32 %v903, %v903
        %v1601 = vmul.f32 %v905, %v905
        %v1602 = vmul.f32 %v908, %v908
        %v1603 = vmul.f32 %v910, %v910
        %v1604 = vmul.f32 %v913, %v913
        %v1605 = vmul.f32 %v915, %v915
        %v1606 = vmul.f32 %v918, %v918
        %v1607 = vmul.f32 %v920, %v920
        %v1608 = vmul.f32 %v923, %v923
        %v1609 = vmul.f32 %v925, %v925
        %v1610 = vmul.f32 %v928, %v928
        %v1611 = vmul.f32 %v930, %v930
        %v1612 = vmul.f32 %v933, %v933
        %v1613 = vmul.f32 %v935, %v935
        %v1614 = vmul.f32 %v938, %v938
        %v1615 = vmul.f32 %v940, %v940
        %v1616 = vmul.f32 %v943, %v943
        %v1617 = vmul.f32 %v945, %v945
        %v1618 = vmul.f32 %v948, %v948
        %v1619 = vmul.f32 %v950, %v950
        %v1620 = vmul.f32 %v953, %v953
        %v1621 = vmul.f32 %v955, %v955
        %v1622 = vmul.f32 %v958, %v958
        %v1623 = vmul.f32 %v960, %v960
        %v1624 = vmul.f32 %v963, %v963
        %v1625 = vmul.f32 %v965, %v965
        %v1626 = vmul.f32 %v968, %v968
        %v1627 = vmul.f32 %v970, %v970
        %v1628 = vmul.f32 %v973, %v973
        %v1629 = vmul.f32 %v975, %v975
        %v1630 = vmul.f32 %v978, %v978
        %v1631 = vmul.f32 %v980, %v980
        %v1632 = vmul.f32 %v983, %v983
        %v1633 = vmul.f32 %v985, %v985
        %v1634 = vmul.f32 %v988, %v988
        %v1635 = vmul.f32 %v990, %v990
        %v1636 = vmul.f32 %v993, %v993
        %v1637 = vmul.f32 %v995, %v995
        %v1638 = vmul.f32 %v998, %v998
        %v1639 = vmul.f32 %v1000, %v1000
        %v1640 = vmul.f32 %v1003, %v1003
        %v1641 = vmul.f32 %v1005, %v1005
        %v1642 = vmul.f32 %v1008, %v1008
        %v1643 = vmul.f32 %v1010, %v1010
        %v1644 = vmul.f32 %v1013, %v1013
        %v1645 = vmul.f32 %v1015, %v1015
        %v1646 = vmul.f32 %v1018, %v1018
        %v1647 = vmul.f32 %v1020, %v1020
        %v1648 = vmul.f32 %v1023, %v1023
        %v1649 = vmul.f32 %v1025, %v1025
        %v1650 = vmul.f32 %v1028, %v1028
        %v1651 = vmul.f32 %v1030, %v1030
        %v1652 = vmul.f32 %v1033, %v1033
        %v1653 = vmul.f32 %v1035, %v1035
        %v1654 = vmul.f32 %v1038, %v1038
        %v1655 = vmul.f32 %v1040, %v1040
        %v1656 = vmul.f32 %v1043, %v1043
        %v1657 = vmul.f32 %v1045, %v1045
        %v1658 = vmul.f32 %v1048, %v1048
        %v1659 = vmul.f32 %v1050, %v1050
        %v1660 = vmul.f32 %v1053, %v1053
        %v1661 = vmul.f32 %v1055, %v1055
        %v1662 = vmul.f32 %v1058, %v1058
        %v1663 = vmul.f32 %v1060, %v1060
        %v1664 = vmul.f32 %v1063, %v1063
        %v1665 = vmul.f32 %v1065, %v1065
        %v1666 = vmul.f32 %v1068, %v1068
        %v1667 = vmul.f32 %v1070, %v1070
        %v1668 = vmul.f32 %v1073, %v1073
        %v1669 = vmul.f32 %v1075, %v1075
        %v1670 = vmul.f32 %v1078, %v1078
        %v1671 = vmul.f32 %v1080, %v1080
        %v1672 = vmul.f32 %v1083, %v1083
        %v1673 = vmul.f32 %v1085, %v1085
        %v1674 = vmul.f32 %v1088, %v1088
        %v1675 = vmul.f32 %v1090, %v1090
        %v1676 = vmul.f32 %v1093, %v1093
        %v1677 = vmul.f32 %v1095, %v1095
        %v1678 = vmul.f32 %v1098, %v1098
        %v1679 = vmul.f32 %v1100, %v1100
        %v1680 = vmul.f32 %v1103, %v1103
        %v1681 = vmul.f32 %v1105, %v1105
        %v1682 = vmul.f32 %v1108, %v1108
        %v1683 = vmul.f32 %v1110, %v1110
        %v1684 = vmul.f32 %v1113, %v1113
        %v1685 = vmul.f32 %v1115, %v1115
        %v1686 = vmul.f32 %v1118, %v1118
        %v1687 = vmul.f32 %v1120, %v1120
        %v1688 = vmul.f32 %v1123, %v1123
        %v1689 = vmul.f32 %v1125, %v1125
        %v1690 = vmul.f32 %v1128, %v1128
        %v1691 = vmul.f32 %v1130, %v1130
        %v1692 = vmul.f32 %v1133, %v1133
        %v1693 = vmul.f32 %v1135, %v1135
        %v1694 = vmul.f32 %v1138, %v1138
        %v1695 = vmul.f32 %v1140, %v1140
        %v1696 = vmul.f32 %v1143, %v1143
        %v1697 = vmul.f32 %v1145, %v1145
        %v1698 = vmul.f32 %v1148, %v1148
        %v1699 = vmul.f32 %v1150, %v1150
        %v1700 = vmul.f32 %v1153, %v1153
        %v1701 = vmul.f32 %v1155, %v1155
        %v1702 = vmul.f32 %v1158, %v1158
        %v1703 = vmul.f32 %v1160, %v1160
        %v1704 = vmul.f32 %v1163, %v1163
        %v1705 = vmul.f32 %v1165, %v1165
        %v1706 = vmul.f32 %v1168, %v1168
        %v1707 = vmul.f32 %v1170, %v1170
        %v1708 = vmul.f32 %v1173, %v1173
        %v1709 = vmul.f32 %v1175, %v1175
        %v1710 = vmul.f32 %v1178, %v1178
        %v1711 = vmul.f32 %v1180, %v1180
        %v1712 = vmul.f32 %v1183, %v1183
        %v1713 = vmul.f32 %v1185, %v1185
        %v1714 = vmul.f32 %v1188, %v1188
        %v1715 = vmul.f32 %v1190, %v1190
        %v1716 = vmul.f32 %v1193, %v1193
        %v1717 = vmul.f32 %v1195, %v1195
        %v1718 = vmul.f32 %v1198, %v1198
        %v1719 = vmul.f32 %v1200, %v1200
        %v1720 = vadd.f32 %v1592, %v1593
        %v1721 = vadd.f32 %v1720, %v1594
        %v1722 = vadd.f32 %v1721, %v1595
        %v1723 = vadd.f32 %v1722, %v1596
        %v1724 = vadd.f32 %v1723, %v1597
        %v1725 = vadd.f32 %v1724, %v1598
        %v1726 = vadd.f32 %v1725, %v1599
        %v1727 = vadd.f32 %v1726, %v1600
        %v1728 = vadd.f32 %v1727, %v1601
        %v1729 = vadd.f32 %v1728, %v1602
        %v1730 = vadd.f32 %v1729, %v1603
        %v1731 = vadd.f32 %v1730, %v1604
        %v1732 = vadd.f32 %v1731, %v1605
        %v1733 = vadd.f32 %v1732, %v1606
        %v1734 = vadd.f32 %v1733, %v1607
        %v1735 = vadd.f32 %v1734, %v1608
        %v1736 = vadd.f32 %v1735, %v1609
        %v1737 = vadd.f32 %v1736, %v1610
        %v1738 = vadd.f32 %v1737, %v1611
        %v1739 = vadd.f32 %v1738, %v1612
        %v1740 = vadd.f32 %v1739, %v1613
        %v1741 = vadd.f32 %v1740, %v1614
        %v1742 = vadd.f32 %v1741, %v1615
        %v1743 = vadd.f32 %v1742, %v1616
        %v1744 = vadd.f32 %v1743, %v1617
        %v1745 = vadd.f32 %v1744, %v1618
        %v1746 = vadd.f32 %v1745, %v1619
        %v1747 = vadd.f32 %v1746, %v1620
        %v1748 = vadd.f32 %v1747, %v1621
        %v1749 = vadd.f32 %v1748, %v1622
        %v1750 = vadd.f32 %v1749, %v1623
        %v1751 = vadd.f32 %v1750, %v1624
        %v1752 = vadd.f32 %v1751, %v1625
        %v1753 = vadd.f32 %v1752, %v1626
        %v1754 = vadd.f32 %v1753, %v1627
        %v1755 = vadd.f32 %v1754, %v1628
        %v1756 = vadd.f32 %v1755, %v1629
        %v1757 = vadd.f32 %v1756, %v1630
        %v1758 = vadd.f32 %v1757, %v1631
        %v1759 = vadd.f32 %v1758, %v1632
        %v1760 = vadd.f32 %v1759, %v1633
        %v1761 = vadd.f32 %v1760, %v1634
        %v1762 = vadd.f32 %v1761, %v1635
        %v1763 = vadd.f32 %v1762, %v1636
        %v1764 = vadd.f32 %v1763, %v1637
        %v1765 = vadd.f32 %v1764, %v1638
        %v1766 = vadd.f32 %v1765, %v1639
        %v1767 = vadd.f32 %v1766, %v1640
        %v1768 = vadd.f32 %v1767, %v1641
        %v1769 = vadd.f32 %v1768, %v1642
        %v1770 = vadd.f32 %v1769, %v1643
        %v1771 = vadd.f32 %v1770, %v1644
        %v1772 = vadd.f32 %v1771, %v1645
        %v1773 = vadd.f32 %v1772, %v1646
        %v1774 = vadd.f32 %v1773, %v1647
        %v1775 = vadd.f32 %v1774, %v1648
        %v1776 = vadd.f32 %v1775, %v1649
        %v1777 = vadd.f32 %v1776, %v1650
        %v1778 = vadd.f32 %v1777, %v1651
        %v1779 = vadd.f32 %v1778, %v1652
        %v1780 = vadd.f32 %v1779, %v1653
        %v1781 = vadd.f32 %v1780, %v1654
        %v1782 = vadd.f32 %v1781, %v1655
        %v1783 = vadd.f32 %v1782, %v1656
        %v1784 = vadd.f32 %v1783, %v1657
        %v1785 = vadd.f32 %v1784, %v1658
        %v1786 = vadd.f32 %v1785, %v1659
        %v1787 = vadd.f32 %v1786, %v1660
        %v1788 = vadd.f32 %v1787, %v1661
        %v1789 = vadd.f32 %v1788, %v1662
        %v1790 = vadd.f32 %v1789, %v1663
        %v1791 = vadd.f32 %v1790, %v1664
        %v1792 = vadd.f32 %v1791, %v1665
        %v1793 = vadd.f32 %v1792, %v1666
        %v1794 = vadd.f32 %v1793, %v1667
        %v1795 = vadd.f32 %v1794, %v1668
        %v1796 = vadd.f32 %v1795, %v1669
        %v1797 = vadd.f32 %v1796, %v1670
        %v1798 = vadd.f32 %v1797, %v1671
        %v1799 = vadd.f32 %v1798, %v1672
        %v1800 = vadd.f32 %v1799, %v1673
        %v1801 = vadd.f32 %v1800, %v1674
        %v1802 = vadd.f32 %v1801, %v1675
        %v1803 = vadd.f32 %v1802, %v1676
        %v1804 = vadd.f32 %v1803, %v1677
        %v1805 = vadd.f32 %v1804, %v1678
        %v1806 = vadd.f32 %v1805, %v1679
        %v1807 = vadd.f32 %v1806, %v1680
        %v1808 = vadd.f32 %v1807, %v1681
        %v1809 = vadd.f32 %v1808, %v1682
        %v1810 = vadd.f32 %v1809, %v1683
        %v1811 = vadd.f32 %v1810, %v1684
        %v1812 = vadd.f32 %v1811, %v1685
        %v1813 = vadd.f32 %v1812, %v1686
        %v1814 = vadd.f32 %v1813, %v1687
        %v1815 = vadd.f32 %v1814, %v1688
        %v1816 = vadd.f32 %v1815, %v1689
        %v1817 = vadd.f32 %v1816, %v1690
        %v1818 = vadd.f32 %v1817, %v1691
        %v1819 = vadd.f32 %v1818, %v1692
        %v1820 = vadd.f32 %v1819, %v1693
        %v1821 = vadd.f32 %v1820, %v1694
        %v1822 = vadd.f32 %v1821, %v1695
        %v1823 = vadd.f32 %v1822, %v1696
        %v1824 = vadd.f32 %v1823, %v1697
        %v1825 = vadd.f32 %v1824, %v1698
        %v1826 = vadd.f32 %v1825, %v1699
        %v1827 = vadd.f32 %v1826, %v1700
        %v1828 = vadd.f32 %v1827, %v1701
        %v1829 = vadd.f32 %v1828, %v1702
        %v1830 = vadd.f32 %v1829, %v1703
        %v1831 = vadd.f32 %v1830, %v1704
        %v1832 = vadd.f32 %v1831, %v1705
        %v1833 = vadd.f32 %v1832, %v1706
        %v1834 = vadd.f32 %v1833, %v1707
        %v1835 = vadd.f32 %v1834, %v1708
        %v1836 = vadd.f32 %v1835, %v1709
        %v1837 = vadd.f32 %v1836, %v1710
        %v1838 = vadd.f32 %v1837, %v1711
        %v1839 = vadd.f32 %v1838, %v1712
        %v1840 = vadd.f32 %v1839, %v1713
        %v1841 = vadd.f32 %v1840, %v1714
        %v1842 = vadd.f32 %v1841, %v1715
        %v1843 = vadd.f32 %v1842, %v1716
        %v1844 = vadd.f32 %v1843, %v1717
        %v1845 = vadd.f32 %v1844, %v1718
        %v1846 = vadd.f32 %v1845, %v1719
        %v1847 = vrot.slane %v1846, 4
        %v1848 = vadd.f32 %v1846, %v1847
        %v1849 = vrot.slane %v1848, 2
        %v1850 = vadd.f32 %v1848, %v1849
        %v1851 = vrot.slane %v1850, 1
        %v1852 = vadd.f32 %v1850, %v1851
        %1853 = vst [vmem:[%s207] sm:$0x1] %v1852
        %s1854 = sand.u32 %s77, 1
        %s1855 = scalar_lea.sflag [#allocation3], %s1854
        %s1856 = sand.u32 %s77, 1
        %s1857 = smul.addr %s1856, 512
        %s1858 = scalar_lea.vmem [#allocation2], %s1857
        %s1859 = sand.u32 %s22, 1
        %s1860 = scalar_lea.sflag [#allocation5], %s1859
        %s1861 = sand.u32 %s103, 1
        %s1862 = scalar_lea.vmem [#allocation4], %s1861
        %s1863 = sand.u32 %s22, 1
        %s1864 = scalar_lea.sflag [#allocation5], %s1863
        %s1865 = sand.u32 %s129, 1
        %s1866 = scalar_lea.vmem [#allocation6], %s1865
        // Predicated region
        $region29: #{tpu_custom_call.1} parent=27 // pred_check
          %p1867 = pneg %p87
        $region30: #{tpu_custom_call.1} parent=27 // pred_check_branch
          %1869 = sbr.rel (%p1867) target = $region32
        $region31: #{tpu_custom_call.1} parent=27 // pred_region
          %s1870 = smul.u32 128, %s22
          %1872 = vsyncadd %s1855, 0
          %s1873 = smul.addr %s1870, 4
          %s1874 = scalar_lea.hbm %s2, %s1873
          %s1875 = sshll.u32 %s1858, 4
          %s1876 = int_to_ptr.vmem [resolvable:$true] %s1875
          %s1877 = sshll.u32 %s1874, 4
          %s1878 = int_to_ptr.hbm [resolvable:$true] %s1877
          %1883 = dma.vmem_to_hbm [thread:$0]  %s1876, 8192, %s1878, %s1855, 64, 64, 4
        $region32: #{tpu_custom_call.1} parent=27 // pred_fallthru
          _
        // Predicated region
        $region33: #{tpu_custom_call.1} parent=27 // pred_check
          %p1884 = pneg %p113
        $region34: #{tpu_custom_call.1} parent=27 // pred_check_branch
          %1886 = sbr.rel (%p1884) target = $region36
        $region35: #{tpu_custom_call.1} parent=27 // pred_region
          %1888 = vsyncadd %s1860, 0
          %s1889 = scalar_lea.hbm %s3, %s22
          %s1891 = sshll.u32 %s1862, 4
          %s1892 = int_to_ptr.vmem [resolvable:$true] %s1891
          %s1893 = sshll.u32 %s1889, 4
          %s1894 = int_to_ptr.hbm [resolvable:$true] %s1893
          %1896 = dma.vmem_to_hbm [thread:$0]  %s1892, 16, %s1894, %s1860
        $region36: #{tpu_custom_call.1} parent=27 // pred_fallthru
          _
        // Predicated region
        $region37: #{tpu_custom_call.1} parent=27 // pred_check
          %p1897 = pneg %p139
        $region38: #{tpu_custom_call.1} parent=27 // pred_check_branch
          %1899 = sbr.rel (%p1897) target = $region40
        $region39: #{tpu_custom_call.1} parent=27 // pred_region
          %1901 = vsyncadd %s1864, 0
          %s1902 = scalar_lea.hbm %s4, %s22
          %s1904 = sshll.u32 %s1866, 4
          %s1905 = int_to_ptr.vmem [resolvable:$true] %s1904
          %s1906 = sshll.u32 %s1902, 4
          %s1907 = int_to_ptr.hbm [resolvable:$true] %s1906
          %1909 = dma.vmem_to_hbm [thread:$0]  %s1905, 16, %s1907, %s1864
        $region40: #{tpu_custom_call.1} parent=27 // pred_fallthru
          _
      $region28: #{tpu_custom_call.1} parent=5 // pred_fallthru
        _
      %p1910 = scmp.le.s32.totalorder 2, %s17
      // Predicated region
      $region41: #{tpu_custom_call.1} parent=5 // pred_check
        %p1911 = pneg %p1910
      $region42: #{tpu_custom_call.1} parent=5 // pred_check_branch
        %1913 = sbr.rel (%p1911) target = $region44
      $region43: #{tpu_custom_call.1} parent=5 // pred_region
        %s1914 = ssub.s32 %s17, 2
        // Predicated region
        $region45: #{tpu_custom_call.1} parent=43 // pred_check
          %p1915 = pneg %p93
        $region46: #{tpu_custom_call.1} parent=43 // pred_check_branch
          %1917 = sbr.rel (%p1915) target = $region48
        $region47: #{tpu_custom_call.1} parent=43 // pred_region
          %s1918 = sand.u32 %s78, 1
          %s1919 = scalar_lea.sflag [#allocation3], %s1918
          %s1920 = sand.u32 %s78, 1
          %s1921 = smul.addr %s1920, 512
          %s1922 = scalar_lea.vmem [#allocation2], %s1921
          %1924 = dma.done %s1919, 8192
        $region48: #{tpu_custom_call.1} parent=43 // pred_fallthru
          _
        // Predicated region
        $region49: #{tpu_custom_call.1} parent=43 // pred_check
          %p1925 = pneg %p119
        $region50: #{tpu_custom_call.1} parent=43 // pred_check_branch
          %1927 = sbr.rel (%p1925) target = $region52
        $region51: #{tpu_custom_call.1} parent=43 // pred_region
          %s1928 = sand.u32 %s23, 1
          %s1929 = scalar_lea.sflag [#allocation5], %s1928
          %s1930 = sand.u32 %s104, 1
          %s1931 = scalar_lea.vmem [#allocation4], %s1930
          %1933 = dma.done %s1929, 16
        $region52: #{tpu_custom_call.1} parent=43 // pred_fallthru
          _
        // Predicated region
        $region53: #{tpu_custom_call.1} parent=43 // pred_check
          %p1934 = pneg %p145
        $region54: #{tpu_custom_call.1} parent=43 // pred_check_branch
          %1936 = sbr.rel (%p1934) target = $region56
        $region55: #{tpu_custom_call.1} parent=43 // pred_region
          %s1937 = sand.u32 %s23, 1
          %s1938 = scalar_lea.sflag [#allocation5], %s1937
          %s1939 = sand.u32 %s130, 1
          %s1940 = scalar_lea.vmem [#allocation6], %s1939
          %1942 = dma.done %s1938, 16
        $region56: #{tpu_custom_call.1} parent=43 // pred_fallthru
          _
      $region44: #{tpu_custom_call.1} parent=5 // pred_fallthru
        _
    $region6: #{tpu_custom_call.1} parent=1 // loop_footer
      %s21 = sadd.s32 1, %s17
    $region7: #{tpu_custom_call.1} parent=1 // loop_footer_branch
      %16 = sbr.rel target = $region3
    $region8: #{tpu_custom_call.1} parent=1 // loop_exit
      _
    %1943 = vsyncpa [#allocation3], 1
    %s1944 = scalar_lea.sflag [#allocation3], 1
    %1945 = vsyncpa %s1944, 1
    %1946 = vsyncpa [#allocation5], 1
    %s1947 = scalar_lea.sflag [#allocation5], 1
    %1948 = vsyncpa %s1947, 1

</llo_original>
